<compile_context>
chip_gen: v6e
topology: v6e:2x2x1
jax: 0.10.0
libtpu: 0.0.40
codegen_flags: <defaults>
</compile_context>

<pallas_src>
import functools

import jax
import jax.numpy as jnp
from jax.experimental import pallas as pl
from jax.experimental.pallas import tpu as pltpu

# ----------------------------- model config ---------------------------------
B = 2            # batch
T = 8            # sequence length
D = 32           # embedding dim
H = 4            # attention heads
HEAD_DIM = D // H
FFN = 4 * D      # residual MLP hidden dim
VOCAB = 64
PAD_IDX = 1
N_LAYERS = 2

EPS = 1e-5                 # torch.nn.LayerNorm default eps
NEG_INF = -1e30            # stand-in for masked_fill(-inf) (avoids inf/NaN on TPU)
MXU_DTYPE = jnp.bfloat16   # matmul operand dtype; accumulation stays f32

_VMEM = pl.BlockSpec(memory_space=pltpu.MemorySpace.VMEM)
_PARAMS_PER_LAYER = 12


# ------------------------------ math helpers ---------------------------------
def _layernorm(x, gamma, beta):
    mean = jnp.mean(x, axis=-1, keepdims=True)
    var = jnp.mean((x - mean) ** 2, axis=-1, keepdims=True)
    return (x - mean) * jax.lax.rsqrt(var + EPS) * gamma + beta


def _gelu(x):
    # TODO(synk): PyTorch F.gelu default is the exact erf GeLU; tanh approximation used here.
    c = 0.7978845608028654  # sqrt(2/pi)
    return 0.5 * x * (1.0 + jnp.tanh(c * (x + 0.044715 * x * x * x)))


def _mm(a, b):
    # bf16 MXU operands, f32 accumulate.
    return jnp.dot(a.astype(MXU_DTYPE), b.astype(MXU_DTYPE),
                   preferred_element_type=jnp.float32)


def _mm_nt(a, b):
    # a @ b.T without materializing a transpose (contract dim 1 of both).
    return jax.lax.dot_general(
        a.astype(MXU_DTYPE), b.astype(MXU_DTYPE),
        dimension_numbers=(((1,), (1,)), ((), ())),
        preferred_element_type=jnp.float32)


# ------------------------------- fused kernel --------------------------------
def _fused_forward_kernel(*refs, n_layers):
    # inputs : emb [B*T, D], pad_rows [B*T, 1], attn_bias [B*T, B*T],
    #          emb_ln_g [1, D], emb_ln_b [1, D], then 12 tensors per layer.
    # outputs: n_layers + 1 state slabs, each [B*T, D] (batch-major rows).
    n_in = 5 + _PARAMS_PER_LAYER * n_layers
    in_refs = refs[:n_in]
    out_refs = refs[n_in:]

    emb_ref, pad_ref, bias_ref, eg_ref, eb_ref = in_refs[:5]
    layer_refs = in_refs[5:]

    attn_bias = bias_ref[...]                                  # [B*T, B*T] f32
    scale = HEAD_DIM ** -0.5

    # ---- embedding LayerNorm + pad mask (state 0) ----------------------------
    x = _layernorm(emb_ref[...], eg_ref[...], eb_ref[...]) * (1.0 - pad_ref[...])
    out_refs[0][...] = x

    for li in range(n_layers):
        (wqkv, bqkv, wout, bout, g1, be1,
         w1, b1, w2, b2, g2, be2) = layer_refs[_PARAMS_PER_LAYER * li:
                                               _PARAMS_PER_LAYER * (li + 1)]

        # ---- multi-head self attention (one [B*T,B*T] score dot per head) ----
        qkv = _mm(x, wqkv[...]) + bqkv[...]                    # [B*T, 3D] f32
        heads = []
        for h in range(H):
            c = h * HEAD_DIM
            qh = qkv[:, c:c + HEAD_DIM] * scale                # [B*T, hd]
            kh = qkv[:, D + c:D + c + HEAD_DIM]
            vh = qkv[:, 2 * D + c:2 * D + c + HEAD_DIM]
            s = _mm_nt(qh, kh) + attn_bias                     # [B*T, B*T] f32
            m = jnp.max(s, axis=-1, keepdims=True)
            e = jnp.exp(s - m)
            p = e * pl.reciprocal(jnp.sum(e, axis=-1, keepdims=True), approx=True)
            heads.append(_mm(p, vh))                           # [B*T, hd]
        attn = jnp.concatenate(heads, axis=-1)                 # [B*T, D]

        # ---- output projection + residual + LayerNorm ------------------------
        y = _mm(attn, wout[...]) + bout[...] + x               # dropout = id
        y = _layernorm(y, g1[...], be1[...])

        # ---- ResidualMLP + LayerNorm ------------------------------------------
        hdn = _gelu(_mm(y, w1[...]) + b1[...])
        z = _mm(hdn, w2[...]) + b2[...] + y
        z = _layernorm(z, g2[...], be2[...])

        out_refs[li + 1][...] = z
        x = z


def fused_forward(emb2d, pad_rows, attn_bias, emb_ln_g, emb_ln_b, layers):
    flat = [emb2d, pad_rows, attn_bias, emb_ln_g, emb_ln_b]
    for lp in layers:
        flat += [lp["w_qkv"], lp["b_qkv"], lp["w_out"], lp["b_out"],
                 lp["ln1_g"], lp["ln1_b"], lp["w1"], lp["b1"],
                 lp["w2"], lp["b2"], lp["ln2_g"], lp["ln2_b"]]
    n_states = len(layers) + 1
    n_rows = emb2d.shape[0]
    return pl.pallas_call(
        functools.partial(_fused_forward_kernel, n_layers=len(layers)),
        out_shape=tuple(jax.ShapeDtypeStruct((n_rows, D), jnp.float32)
                        for _ in range(n_states)),
        in_specs=[_VMEM] * len(flat),
        out_specs=tuple([_VMEM] * n_states),
    )(*flat)


# --------------------------- transformer forward ------------------------------
@jax.jit
def accelerator_transformer_forward(tokens, params):
    # padding_mask = tokens.eq(padding_idx)
    pad_mask = (tokens == PAD_IDX)                               # [B, T] bool
    mask_f = pad_mask.astype(jnp.float32)

    # embedding lookups (gather) stay in plain JAX glue (fused under jit)
    tok_emb = jnp.take(params["token_emb"], tokens, axis=0)      # [B, T, D]
    nonpad = (~pad_mask).astype(jnp.int32)
    positions = jnp.cumsum(nonpad, axis=1) * nonpad + PAD_IDX    # make_positions
    pos_emb = jnp.take(params["pos_emb"], positions, axis=0)     # [B, T, D]

    emb2d = (tok_emb + pos_emb).reshape(B * T, D)                # batch-major rows
    pad_rows = mask_f.reshape(B * T, 1)

    # Additive attention bias [B*T, B*T]: 0 where query and key rows belong to
    # the same batch AND the key is not padding; NEG_INF otherwise.  The
    # block-diagonal batch mask lets every head use a single full-slab score
    # matmul while remaining equivalent to per-batch attention.
    batch_ids = jnp.repeat(jnp.arange(B, dtype=jnp.int32), T)    # [B*T]
    same_batch = batch_ids[:, None] == batch_ids[None, :]
    key_ok = ~pad_mask.reshape(B * T)
    attn_bias = jnp.where(same_batch & key_ok[None, :],
                          0.0, NEG_INF).astype(jnp.float32)      # [B*T, B*T]

    states_2d = fused_forward(emb2d, pad_rows, attn_bias,
                              params["emb_ln_g"], params["emb_ln_b"],
                              params["layers"])
    # kernel rows are batch-major [B*T, D]; present states as PyTorch [T, B, D]
    return [jnp.transpose(s.reshape(B, T, D), (1, 0, 2)) for s in states_2d]


# ------------------------------ param init ------------------------------------
def init_params(key):
    ks = iter(jax.random.split(key, 8 + 10 * N_LAYERS))

    def rnd(shape, scale=0.02):
        return (scale * jax.random.normal(next(ks), shape)).astype(jnp.float32)

    token_emb = rnd((VOCAB, D), 1.0).at[PAD_IDX].set(0.0)
    pos_emb = rnd((T + PAD_IDX + 2, D), 1.0).at[PAD_IDX].set(0.0)

    params = {
        "token_emb": token_emb,
        "pos_emb": pos_emb,
        "emb_ln_g": jnp.ones((1, D), jnp.float32),
        "emb_ln_b": jnp.zeros((1, D), jnp.float32),
        "layers": [],
    }
    for _ in range(N_LAYERS):
        params["layers"].append({
            "w_qkv": rnd((D, 3 * D)), "b_qkv": rnd((1, 3 * D)),
            "w_out": rnd((D, D)),     "b_out": rnd((1, D)),
            "ln1_g": jnp.ones((1, D), jnp.float32),
            "ln1_b": jnp.zeros((1, D), jnp.float32),
            "w1": rnd((D, FFN)), "b1": rnd((1, FFN)),
            "w2": rnd((FFN, D)), "b2": rnd((1, D)),
            "ln2_g": jnp.ones((1, D), jnp.float32),
            "ln2_b": jnp.zeros((1, D), jnp.float32),
        })
    return params


if __name__ == "__main__":
    key = jax.random.PRNGKey(0)
    k_param, k_tok = jax.random.split(key)

    params = init_params(k_param)
    tokens = jax.random.randint(k_tok, (B, T), 2, VOCAB, dtype=jnp.int32)
    tokens = tokens.at[0, -2:].set(PAD_IDX)   # exercise the padding mask
    tokens = tokens.at[1, -1:].set(PAD_IDX)

    states = accelerator_transformer_forward(tokens, params)
    states = [jax.block_until_ready(s) for s in states]

    assert len(states) == N_LAYERS + 1
    for s in states:
        assert s.shape == (T, B, D)
        assert bool(jnp.all(jnp.isfinite(s)))
    print("KERNEL_OK")
</pallas_src>

<mosaic_0001>
module attributes {stable_mosaic.version = 11 : i64} {
  func.func @_fused_forward_kernel(%arg0: memref<16x32xf32, #tpu.memory_space<vmem>>, %arg1: memref<16x1xf32, #tpu.memory_space<vmem>>, %arg2: memref<16x16xf32, #tpu.memory_space<vmem>>, %arg3: memref<1x32xf32, #tpu.memory_space<vmem>>, %arg4: memref<1x32xf32, #tpu.memory_space<vmem>>, %arg5: memref<32x96xf32, #tpu.memory_space<vmem>>, %arg6: memref<1x96xf32, #tpu.memory_space<vmem>>, %arg7: memref<32x32xf32, #tpu.memory_space<vmem>>, %arg8: memref<1x32xf32, #tpu.memory_space<vmem>>, %arg9: memref<1x32xf32, #tpu.memory_space<vmem>>, %arg10: memref<1x32xf32, #tpu.memory_space<vmem>>, %arg11: memref<32x128xf32, #tpu.memory_space<vmem>>, %arg12: memref<1x128xf32, #tpu.memory_space<vmem>>, %arg13: memref<128x32xf32, #tpu.memory_space<vmem>>, %arg14: memref<1x32xf32, #tpu.memory_space<vmem>>, %arg15: memref<1x32xf32, #tpu.memory_space<vmem>>, %arg16: memref<1x32xf32, #tpu.memory_space<vmem>>, %arg17: memref<32x96xf32, #tpu.memory_space<vmem>>, %arg18: memref<1x96xf32, #tpu.memory_space<vmem>>, %arg19: memref<32x32xf32, #tpu.memory_space<vmem>>, %arg20: memref<1x32xf32, #tpu.memory_space<vmem>>, %arg21: memref<1x32xf32, #tpu.memory_space<vmem>>, %arg22: memref<1x32xf32, #tpu.memory_space<vmem>>, %arg23: memref<32x128xf32, #tpu.memory_space<vmem>>, %arg24: memref<1x128xf32, #tpu.memory_space<vmem>>, %arg25: memref<128x32xf32, #tpu.memory_space<vmem>>, %arg26: memref<1x32xf32, #tpu.memory_space<vmem>>, %arg27: memref<1x32xf32, #tpu.memory_space<vmem>>, %arg28: memref<1x32xf32, #tpu.memory_space<vmem>>, %arg29: memref<16x32xf32, #tpu.memory_space<vmem>>, %arg30: memref<16x32xf32, #tpu.memory_space<vmem>>, %arg31: memref<16x32xf32, #tpu.memory_space<vmem>>) attributes {dimension_semantics = [], scalar_prefetch = 0 : i64, scratch_operands = 0 : i64, tpu.core_type = #tpu.core_type<tc>} {
    %c0 = arith.constant 0 : index
    %c0_0 = arith.constant 0 : index
    %0 = vector.load %arg2[%c0, %c0_0] : memref<16x16xf32, #tpu.memory_space<vmem>>, vector<16x16xf32>
    %c0_1 = arith.constant 0 : index
    %c0_2 = arith.constant 0 : index
    %1 = vector.load %arg0[%c0_1, %c0_2] : memref<16x32xf32, #tpu.memory_space<vmem>>, vector<16x32xf32>
    %c0_3 = arith.constant 0 : index
    %c0_4 = arith.constant 0 : index
    %2 = vector.load %arg3[%c0_3, %c0_4] : memref<1x32xf32, #tpu.memory_space<vmem>>, vector<1x32xf32>
    %c0_5 = arith.constant 0 : index
    %c0_6 = arith.constant 0 : index
    %3 = vector.load %arg4[%c0_5, %c0_6] : memref<1x32xf32, #tpu.memory_space<vmem>>, vector<1x32xf32>
    %cst = arith.constant dense<0.000000e+00> : vector<16xf32>
    %4 = vector.multi_reduction <add>, %1, %cst [1] : vector<16x32xf32> to vector<16xf32>
    %5 = vector.shape_cast %4 : vector<16xf32> to vector<16x1xf32>
    %cst_7 = arith.constant 3.200000e+01 : f32
    %6 = vector.broadcast %cst_7 : f32 to vector<16x1xf32>
    %7 = arith.divf %5, %6 : vector<16x1xf32>
    %8 = vector.broadcast %7 : vector<16x1xf32> to vector<16x32xf32>
    %9 = arith.subf %1, %8 : vector<16x32xf32>
    %10 = arith.mulf %9, %9 : vector<16x32xf32>
    %cst_8 = arith.constant dense<0.000000e+00> : vector<16xf32>
    %11 = vector.multi_reduction <add>, %10, %cst_8 [1] : vector<16x32xf32> to vector<16xf32>
    %12 = vector.shape_cast %11 : vector<16xf32> to vector<16x1xf32>
    %cst_9 = arith.constant 3.200000e+01 : f32
    %13 = vector.broadcast %cst_9 : f32 to vector<16x1xf32>
    %14 = arith.divf %12, %13 : vector<16x1xf32>
    %15 = vector.broadcast %7 : vector<16x1xf32> to vector<16x32xf32>
    %16 = arith.subf %1, %15 : vector<16x32xf32>
    %cst_10 = arith.constant 9.99999974E-6 : f32
    %17 = vector.broadcast %cst_10 : f32 to vector<16x1xf32>
    %18 = arith.addf %14, %17 : vector<16x1xf32>
    %19 = math.rsqrt %18 : vector<16x1xf32>
    %20 = vector.broadcast %19 : vector<16x1xf32> to vector<16x32xf32>
    %21 = arith.mulf %16, %20 : vector<16x32xf32>
    %22 = vector.broadcast %2 : vector<1x32xf32> to vector<16x32xf32>
    %23 = arith.mulf %21, %22 : vector<16x32xf32>
    %24 = vector.broadcast %3 : vector<1x32xf32> to vector<16x32xf32>
    %25 = arith.addf %23, %24 : vector<16x32xf32>
    %c0_11 = arith.constant 0 : index
    %c0_12 = arith.constant 0 : index
    %26 = vector.load %arg1[%c0_11, %c0_12] : memref<16x1xf32, #tpu.memory_space<vmem>>, vector<16x1xf32>
    %cst_13 = arith.constant 1.000000e+00 : f32
    %27 = vector.broadcast %cst_13 : f32 to vector<16x1xf32>
    %28 = arith.subf %27, %26 : vector<16x1xf32>
    %29 = vector.broadcast %28 : vector<16x1xf32> to vector<16x32xf32>
    %30 = arith.mulf %25, %29 : vector<16x32xf32>
    %c0_14 = arith.constant 0 : index
    %c0_15 = arith.constant 0 : index
    %31 = vector.load %arg29[%c0_14, %c0_15] : memref<16x32xf32, #tpu.memory_space<vmem>>, vector<16x32xf32>
    tpu.vector_store %arg29[%c0_14, %c0_15], %30 {strides = array<i32>} : memref<16x32xf32, #tpu.memory_space<vmem>>, vector<16x32xf32>,
    %c0_16 = arith.constant 0 : index
    %c0_17 = arith.constant 0 : index
    %32 = vector.load %arg5[%c0_16, %c0_17] : memref<32x96xf32, #tpu.memory_space<vmem>>, vector<32x96xf32>
    %33 = arith.truncf %30 : vector<16x32xf32> to vector<16x32xbf16>
    %34 = arith.truncf %32 : vector<32x96xf32> to vector<32x96xbf16>
    %cst_18 = arith.constant dense<0.000000e+00> : vector<16x96xf32>
    %35 = tpu.matmul %33, %34, %cst_18 {dimension_numbers = #tpu.dot_dimension_numbers<[1], [0], [0], [1], [0, 0, 1, 1], [], []>} : vector<16x32xbf16>, vector<32x96xbf16>, vector<16x96xf32> -> vector<16x96xf32>
    %c0_19 = arith.constant 0 : index
    %c0_20 = arith.constant 0 : index
    %36 = vector.load %arg6[%c0_19, %c0_20] : memref<1x96xf32, #tpu.memory_space<vmem>>, vector<1x96xf32>
    %37 = vector.broadcast %36 : vector<1x96xf32> to vector<16x96xf32>
    %38 = arith.addf %35, %37 : vector<16x96xf32>
    %39 = vector.extract_strided_slice %38 {offsets = [0, 0], sizes = [16, 8], strides = [1, 1]} : vector<16x96xf32> to vector<16x8xf32>
    %cst_21 = arith.constant 0.353553385 : f32
    %40 = vector.broadcast %cst_21 : f32 to vector<16x8xf32>
    %41 = arith.mulf %39, %40 : vector<16x8xf32>
    %42 = vector.extract_strided_slice %38 {offsets = [0, 32], sizes = [16, 8], strides = [1, 1]} : vector<16x96xf32> to vector<16x8xf32>
    %43 = vector.extract_strided_slice %38 {offsets = [0, 64], sizes = [16, 8], strides = [1, 1]} : vector<16x96xf32> to vector<16x8xf32>
    %44 = arith.truncf %41 : vector<16x8xf32> to vector<16x8xbf16>
    %45 = arith.truncf %42 : vector<16x8xf32> to vector<16x8xbf16>
    %cst_22 = arith.constant dense<0.000000e+00> : vector<16x16xf32>
    %46 = tpu.matmul %44, %45, %cst_22 {dimension_numbers = #tpu.dot_dimension_numbers<[1], [1], [0], [0], [0, 0, 1, 0], [], []>} : vector<16x8xbf16>, vector<16x8xbf16>, vector<16x16xf32> -> vector<16x16xf32>
    %47 = arith.addf %46, %0 : vector<16x16xf32>
    %cst_23 = arith.constant dense<0xFF800000> : vector<16xf32>
    %48 = vector.multi_reduction <maximumf>, %47, %cst_23 [1] : vector<16x16xf32> to vector<16xf32>
    %49 = vector.shape_cast %48 : vector<16xf32> to vector<16x1xf32>
    %50 = vector.broadcast %49 : vector<16x1xf32> to vector<16x16xf32>
    %51 = arith.subf %47, %50 : vector<16x16xf32>
    %52 = math.exp %51 : vector<16x16xf32>
    %cst_24 = arith.constant dense<0.000000e+00> : vector<16xf32>
    %53 = vector.multi_reduction <add>, %52, %cst_24 [1] : vector<16x16xf32> to vector<16xf32>
    %54 = vector.shape_cast %53 : vector<16xf32> to vector<16x1xf32>
    %55 = tpu.reciprocal %54 {approx = true} : vector<16x1xf32> -> vector<16x1xf32>
    %56 = vector.broadcast %55 : vector<16x1xf32> to vector<16x16xf32>
    %57 = arith.mulf %52, %56 : vector<16x16xf32>
    %58 = arith.truncf %57 : vector<16x16xf32> to vector<16x16xbf16>
    %59 = arith.truncf %43 : vector<16x8xf32> to vector<16x8xbf16>
    %cst_25 = arith.constant dense<0.000000e+00> : vector<16x8xf32>
    %60 = tpu.matmul %58, %59, %cst_25 {dimension_numbers = #tpu.dot_dimension_numbers<[1], [0], [0], [1], [0, 0, 1, 1], [], []>} : vector<16x16xbf16>, vector<16x8xbf16>, vector<16x8xf32> -> vector<16x8xf32>
    %61 = vector.extract_strided_slice %38 {offsets = [0, 8], sizes = [16, 8], strides = [1, 1]} : vector<16x96xf32> to vector<16x8xf32>
    %cst_26 = arith.constant 0.353553385 : f32
    %62 = vector.broadcast %cst_26 : f32 to vector<16x8xf32>
    %63 = arith.mulf %61, %62 : vector<16x8xf32>
    %64 = vector.extract_strided_slice %38 {offsets = [0, 40], sizes = [16, 8], strides = [1, 1]} : vector<16x96xf32> to vector<16x8xf32>
    %65 = vector.extract_strided_slice %38 {offsets = [0, 72], sizes = [16, 8], strides = [1, 1]} : vector<16x96xf32> to vector<16x8xf32>
    %66 = arith.truncf %63 : vector<16x8xf32> to vector<16x8xbf16>
    %67 = arith.truncf %64 : vector<16x8xf32> to vector<16x8xbf16>
    %cst_27 = arith.constant dense<0.000000e+00> : vector<16x16xf32>
    %68 = tpu.matmul %66, %67, %cst_27 {dimension_numbers = #tpu.dot_dimension_numbers<[1], [1], [0], [0], [0, 0, 1, 0], [], []>} : vector<16x8xbf16>, vector<16x8xbf16>, vector<16x16xf32> -> vector<16x16xf32>
    %69 = arith.addf %68, %0 : vector<16x16xf32>
    %cst_28 = arith.constant dense<0xFF800000> : vector<16xf32>
    %70 = vector.multi_reduction <maximumf>, %69, %cst_28 [1] : vector<16x16xf32> to vector<16xf32>
    %71 = vector.shape_cast %70 : vector<16xf32> to vector<16x1xf32>
    %72 = vector.broadcast %71 : vector<16x1xf32> to vector<16x16xf32>
    %73 = arith.subf %69, %72 : vector<16x16xf32>
    %74 = math.exp %73 : vector<16x16xf32>
    %cst_29 = arith.constant dense<0.000000e+00> : vector<16xf32>
    %75 = vector.multi_reduction <add>, %74, %cst_29 [1] : vector<16x16xf32> to vector<16xf32>
    %76 = vector.shape_cast %75 : vector<16xf32> to vector<16x1xf32>
    %77 = tpu.reciprocal %76 {approx = true} : vector<16x1xf32> -> vector<16x1xf32>
    %78 = vector.broadcast %77 : vector<16x1xf32> to vector<16x16xf32>
    %79 = arith.mulf %74, %78 : vector<16x16xf32>
    %80 = arith.truncf %79 : vector<16x16xf32> to vector<16x16xbf16>
    %81 = arith.truncf %65 : vector<16x8xf32> to vector<16x8xbf16>
    %cst_30 = arith.constant dense<0.000000e+00> : vector<16x8xf32>
    %82 = tpu.matmul %80, %81, %cst_30 {dimension_numbers = #tpu.dot_dimension_numbers<[1], [0], [0], [1], [0, 0, 1, 1], [], []>} : vector<16x16xbf16>, vector<16x8xbf16>, vector<16x8xf32> -> vector<16x8xf32>
    %83 = vector.extract_strided_slice %38 {offsets = [0, 16], sizes = [16, 8], strides = [1, 1]} : vector<16x96xf32> to vector<16x8xf32>
    %cst_31 = arith.constant 0.353553385 : f32
    %84 = vector.broadcast %cst_31 : f32 to vector<16x8xf32>
    %85 = arith.mulf %83, %84 : vector<16x8xf32>
    %86 = vector.extract_strided_slice %38 {offsets = [0, 48], sizes = [16, 8], strides = [1, 1]} : vector<16x96xf32> to vector<16x8xf32>
    %87 = vector.extract_strided_slice %38 {offsets = [0, 80], sizes = [16, 8], strides = [1, 1]} : vector<16x96xf32> to vector<16x8xf32>
    %88 = arith.truncf %85 : vector<16x8xf32> to vector<16x8xbf16>
    %89 = arith.truncf %86 : vector<16x8xf32> to vector<16x8xbf16>
    %cst_32 = arith.constant dense<0.000000e+00> : vector<16x16xf32>
    %90 = tpu.matmul %88, %89, %cst_32 {dimension_numbers = #tpu.dot_dimension_numbers<[1], [1], [0], [0], [0, 0, 1, 0], [], []>} : vector<16x8xbf16>, vector<16x8xbf16>, vector<16x16xf32> -> vector<16x16xf32>
    %91 = arith.addf %90, %0 : vector<16x16xf32>
    %cst_33 = arith.constant dense<0xFF800000> : vector<16xf32>
    %92 = vector.multi_reduction <maximumf>, %91, %cst_33 [1] : vector<16x16xf32> to vector<16xf32>
    %93 = vector.shape_cast %92 : vector<16xf32> to vector<16x1xf32>
    %94 = vector.broadcast %93 : vector<16x1xf32> to vector<16x16xf32>
    %95 = arith.subf %91, %94 : vector<16x16xf32>
    %96 = math.exp %95 : vector<16x16xf32>
    %cst_34 = arith.constant dense<0.000000e+00> : vector<16xf32>
    %97 = vector.multi_reduction <add>, %96, %cst_34 [1] : vector<16x16xf32> to vector<16xf32>
    %98 = vector.shape_cast %97 : vector<16xf32> to vector<16x1xf32>
    %99 = tpu.reciprocal %98 {approx = true} : vector<16x1xf32> -> vector<16x1xf32>
    %100 = vector.broadcast %99 : vector<16x1xf32> to vector<16x16xf32>
    %101 = arith.mulf %96, %100 : vector<16x16xf32>
    %102 = arith.truncf %101 : vector<16x16xf32> to vector<16x16xbf16>
    %103 = arith.truncf %87 : vector<16x8xf32> to vector<16x8xbf16>
    %cst_35 = arith.constant dense<0.000000e+00> : vector<16x8xf32>
    %104 = tpu.matmul %102, %103, %cst_35 {dimension_numbers = #tpu.dot_dimension_numbers<[1], [0], [0], [1], [0, 0, 1, 1], [], []>} : vector<16x16xbf16>, vector<16x8xbf16>, vector<16x8xf32> -> vector<16x8xf32>
    %105 = vector.extract_strided_slice %38 {offsets = [0, 24], sizes = [16, 8], strides = [1, 1]} : vector<16x96xf32> to vector<16x8xf32>
    %cst_36 = arith.constant 0.353553385 : f32
    %106 = vector.broadcast %cst_36 : f32 to vector<16x8xf32>
    %107 = arith.mulf %105, %106 : vector<16x8xf32>
    %108 = vector.extract_strided_slice %38 {offsets = [0, 56], sizes = [16, 8], strides = [1, 1]} : vector<16x96xf32> to vector<16x8xf32>
    %109 = vector.extract_strided_slice %38 {offsets = [0, 88], sizes = [16, 8], strides = [1, 1]} : vector<16x96xf32> to vector<16x8xf32>
    %110 = arith.truncf %107 : vector<16x8xf32> to vector<16x8xbf16>
    %111 = arith.truncf %108 : vector<16x8xf32> to vector<16x8xbf16>
    %cst_37 = arith.constant dense<0.000000e+00> : vector<16x16xf32>
    %112 = tpu.matmul %110, %111, %cst_37 {dimension_numbers = #tpu.dot_dimension_numbers<[1], [1], [0], [0], [0, 0, 1, 0], [], []>} : vector<16x8xbf16>, vector<16x8xbf16>, vector<16x16xf32> -> vector<16x16xf32>
    %113 = arith.addf %112, %0 : vector<16x16xf32>
    %cst_38 = arith.constant dense<0xFF800000> : vector<16xf32>
    %114 = vector.multi_reduction <maximumf>, %113, %cst_38 [1] : vector<16x16xf32> to vector<16xf32>
    %115 = vector.shape_cast %114 : vector<16xf32> to vector<16x1xf32>
    %116 = vector.broadcast %115 : vector<16x1xf32> to vector<16x16xf32>
    %117 = arith.subf %113, %116 : vector<16x16xf32>
    %118 = math.exp %117 : vector<16x16xf32>
    %cst_39 = arith.constant dense<0.000000e+00> : vector<16xf32>
    %119 = vector.multi_reduction <add>, %118, %cst_39 [1] : vector<16x16xf32> to vector<16xf32>
    %120 = vector.shape_cast %119 : vector<16xf32> to vector<16x1xf32>
    %121 = tpu.reciprocal %120 {approx = true} : vector<16x1xf32> -> vector<16x1xf32>
    %122 = vector.broadcast %121 : vector<16x1xf32> to vector<16x16xf32>
    %123 = arith.mulf %118, %122 : vector<16x16xf32>
    %124 = arith.truncf %123 : vector<16x16xf32> to vector<16x16xbf16>
    %125 = arith.truncf %109 : vector<16x8xf32> to vector<16x8xbf16>
    %cst_40 = arith.constant dense<0.000000e+00> : vector<16x8xf32>
    %126 = tpu.matmul %124, %125, %cst_40 {dimension_numbers = #tpu.dot_dimension_numbers<[1], [0], [0], [1], [0, 0, 1, 1], [], []>} : vector<16x16xbf16>, vector<16x8xbf16>, vector<16x8xf32> -> vector<16x8xf32>
    %127 = tpu.concatenate %60, %82, %104, %126 in 1 : vector<16x8xf32>, vector<16x8xf32>, vector<16x8xf32>, vector<16x8xf32> -> vector<16x32xf32>
    %c0_41 = arith.constant 0 : index
    %c0_42 = arith.constant 0 : index
    %128 = vector.load %arg7[%c0_41, %c0_42] : memref<32x32xf32, #tpu.memory_space<vmem>>, vector<32x32xf32>
    %129 = arith.truncf %127 : vector<16x32xf32> to vector<16x32xbf16>
    %130 = arith.truncf %128 : vector<32x32xf32> to vector<32x32xbf16>
    %cst_43 = arith.constant dense<0.000000e+00> : vector<16x32xf32>
    %131 = tpu.matmul %129, %130, %cst_43 {dimension_numbers = #tpu.dot_dimension_numbers<[1], [0], [0], [1], [0, 0, 1, 1], [], []>} : vector<16x32xbf16>, vector<32x32xbf16>, vector<16x32xf32> -> vector<16x32xf32>
    %c0_44 = arith.constant 0 : index
    %c0_45 = arith.constant 0 : index
    %132 = vector.load %arg8[%c0_44, %c0_45] : memref<1x32xf32, #tpu.memory_space<vmem>>, vector<1x32xf32>
    %133 = vector.broadcast %132 : vector<1x32xf32> to vector<16x32xf32>
    %134 = arith.addf %131, %133 : vector<16x32xf32>
    %135 = arith.addf %134, %30 : vector<16x32xf32>
    %c0_46 = arith.constant 0 : index
    %c0_47 = arith.constant 0 : index
    %136 = vector.load %arg9[%c0_46, %c0_47] : memref<1x32xf32, #tpu.memory_space<vmem>>, vector<1x32xf32>
    %c0_48 = arith.constant 0 : index
    %c0_49 = arith.constant 0 : index
    %137 = vector.load %arg10[%c0_48, %c0_49] : memref<1x32xf32, #tpu.memory_space<vmem>>, vector<1x32xf32>
    %cst_50 = arith.constant dense<0.000000e+00> : vector<16xf32>
    %138 = vector.multi_reduction <add>, %135, %cst_50 [1] : vector<16x32xf32> to vector<16xf32>
    %139 = vector.shape_cast %138 : vector<16xf32> to vector<16x1xf32>
    %cst_51 = arith.constant 3.200000e+01 : f32
    %140 = vector.broadcast %cst_51 : f32 to vector<16x1xf32>
    %141 = arith.divf %139, %140 : vector<16x1xf32>
    %142 = vector.broadcast %141 : vector<16x1xf32> to vector<16x32xf32>
    %143 = arith.subf %135, %142 : vector<16x32xf32>
    %144 = arith.mulf %143, %143 : vector<16x32xf32>
    %cst_52 = arith.constant dense<0.000000e+00> : vector<16xf32>
    %145 = vector.multi_reduction <add>, %144, %cst_52 [1] : vector<16x32xf32> to vector<16xf32>
    %146 = vector.shape_cast %145 : vector<16xf32> to vector<16x1xf32>
    %cst_53 = arith.constant 3.200000e+01 : f32
    %147 = vector.broadcast %cst_53 : f32 to vector<16x1xf32>
    %148 = arith.divf %146, %147 : vector<16x1xf32>
    %149 = vector.broadcast %141 : vector<16x1xf32> to vector<16x32xf32>
    %150 = arith.subf %135, %149 : vector<16x32xf32>
    %cst_54 = arith.constant 9.99999974E-6 : f32
    %151 = vector.broadcast %cst_54 : f32 to vector<16x1xf32>
    %152 = arith.addf %148, %151 : vector<16x1xf32>
    %153 = math.rsqrt %152 : vector<16x1xf32>
    %154 = vector.broadcast %153 : vector<16x1xf32> to vector<16x32xf32>
    %155 = arith.mulf %150, %154 : vector<16x32xf32>
    %156 = vector.broadcast %136 : vector<1x32xf32> to vector<16x32xf32>
    %157 = arith.mulf %155, %156 : vector<16x32xf32>
    %158 = vector.broadcast %137 : vector<1x32xf32> to vector<16x32xf32>
    %159 = arith.addf %157, %158 : vector<16x32xf32>
    %c0_55 = arith.constant 0 : index
    %c0_56 = arith.constant 0 : index
    %160 = vector.load %arg11[%c0_55, %c0_56] : memref<32x128xf32, #tpu.memory_space<vmem>>, vector<32x128xf32>
    %161 = arith.truncf %159 : vector<16x32xf32> to vector<16x32xbf16>
    %162 = arith.truncf %160 : vector<32x128xf32> to vector<32x128xbf16>
    %cst_57 = arith.constant dense<0.000000e+00> : vector<16x128xf32>
    %163 = tpu.matmul %161, %162, %cst_57 {dimension_numbers = #tpu.dot_dimension_numbers<[1], [0], [0], [1], [0, 0, 1, 1], [], []>} : vector<16x32xbf16>, vector<32x128xbf16>, vector<16x128xf32> -> vector<16x128xf32>
    %c0_58 = arith.constant 0 : index
    %c0_59 = arith.constant 0 : index
    %164 = vector.load %arg12[%c0_58, %c0_59] : memref<1x128xf32, #tpu.memory_space<vmem>>, vector<1x128xf32>
    %165 = vector.broadcast %164 : vector<1x128xf32> to vector<16x128xf32>
    %166 = arith.addf %163, %165 : vector<16x128xf32>
    %cst_60 = arith.constant 5.000000e-01 : f32
    %167 = vector.broadcast %cst_60 : f32 to vector<16x128xf32>
    %168 = arith.mulf %167, %166 : vector<16x128xf32>
    %cst_61 = arith.constant 4.471500e-02 : f32
    %169 = vector.broadcast %cst_61 : f32 to vector<16x128xf32>
    %170 = arith.mulf %169, %166 : vector<16x128xf32>
    %171 = arith.mulf %170, %166 : vector<16x128xf32>
    %172 = arith.mulf %171, %166 : vector<16x128xf32>
    %173 = arith.addf %166, %172 : vector<16x128xf32>
    %cst_62 = arith.constant 0.797884583 : f32
    %174 = vector.broadcast %cst_62 : f32 to vector<16x128xf32>
    %175 = arith.mulf %174, %173 : vector<16x128xf32>
    %176 = math.tanh %175 : vector<16x128xf32>
    %cst_63 = arith.constant 1.000000e+00 : f32
    %177 = vector.broadcast %cst_63 : f32 to vector<16x128xf32>
    %178 = arith.addf %177, %176 : vector<16x128xf32>
    %179 = arith.mulf %168, %178 : vector<16x128xf32>
    %c0_64 = arith.constant 0 : index
    %c0_65 = arith.constant 0 : index
    %180 = vector.load %arg13[%c0_64, %c0_65] : memref<128x32xf32, #tpu.memory_space<vmem>>, vector<128x32xf32>
    %181 = arith.truncf %179 : vector<16x128xf32> to vector<16x128xbf16>
    %182 = arith.truncf %180 : vector<128x32xf32> to vector<128x32xbf16>
    %cst_66 = arith.constant dense<0.000000e+00> : vector<16x32xf32>
    %183 = tpu.matmul %181, %182, %cst_66 {dimension_numbers = #tpu.dot_dimension_numbers<[1], [0], [0], [1], [0, 0, 1, 1], [], []>} : vector<16x128xbf16>, vector<128x32xbf16>, vector<16x32xf32> -> vector<16x32xf32>
    %c0_67 = arith.constant 0 : index
    %c0_68 = arith.constant 0 : index
    %184 = vector.load %arg14[%c0_67, %c0_68] : memref<1x32xf32, #tpu.memory_space<vmem>>, vector<1x32xf32>
    %185 = vector.broadcast %184 : vector<1x32xf32> to vector<16x32xf32>
    %186 = arith.addf %183, %185 : vector<16x32xf32>
    %187 = arith.addf %186, %159 : vector<16x32xf32>
    %c0_69 = arith.constant 0 : index
    %c0_70 = arith.constant 0 : index
    %188 = vector.load %arg15[%c0_69, %c0_70] : memref<1x32xf32, #tpu.memory_space<vmem>>, vector<1x32xf32>
    %c0_71 = arith.constant 0 : index
    %c0_72 = arith.constant 0 : index
    %189 = vector.load %arg16[%c0_71, %c0_72] : memref<1x32xf32, #tpu.memory_space<vmem>>, vector<1x32xf32>
    %cst_73 = arith.constant dense<0.000000e+00> : vector<16xf32>
    %190 = vector.multi_reduction <add>, %187, %cst_73 [1] : vector<16x32xf32> to vector<16xf32>
    %191 = vector.shape_cast %190 : vector<16xf32> to vector<16x1xf32>
    %cst_74 = arith.constant 3.200000e+01 : f32
    %192 = vector.broadcast %cst_74 : f32 to vector<16x1xf32>
    %193 = arith.divf %191, %192 : vector<16x1xf32>
    %194 = vector.broadcast %193 : vector<16x1xf32> to vector<16x32xf32>
    %195 = arith.subf %187, %194 : vector<16x32xf32>
    %196 = arith.mulf %195, %195 : vector<16x32xf32>
    %cst_75 = arith.constant dense<0.000000e+00> : vector<16xf32>
    %197 = vector.multi_reduction <add>, %196, %cst_75 [1] : vector<16x32xf32> to vector<16xf32>
    %198 = vector.shape_cast %197 : vector<16xf32> to vector<16x1xf32>
    %cst_76 = arith.constant 3.200000e+01 : f32
    %199 = vector.broadcast %cst_76 : f32 to vector<16x1xf32>
    %200 = arith.divf %198, %199 : vector<16x1xf32>
    %201 = vector.broadcast %193 : vector<16x1xf32> to vector<16x32xf32>
    %202 = arith.subf %187, %201 : vector<16x32xf32>
    %cst_77 = arith.constant 9.99999974E-6 : f32
    %203 = vector.broadcast %cst_77 : f32 to vector<16x1xf32>
    %204 = arith.addf %200, %203 : vector<16x1xf32>
    %205 = math.rsqrt %204 : vector<16x1xf32>
    %206 = vector.broadcast %205 : vector<16x1xf32> to vector<16x32xf32>
    %207 = arith.mulf %202, %206 : vector<16x32xf32>
    %208 = vector.broadcast %188 : vector<1x32xf32> to vector<16x32xf32>
    %209 = arith.mulf %207, %208 : vector<16x32xf32>
    %210 = vector.broadcast %189 : vector<1x32xf32> to vector<16x32xf32>
    %211 = arith.addf %209, %210 : vector<16x32xf32>
    %c0_78 = arith.constant 0 : index
    %c0_79 = arith.constant 0 : index
    %212 = vector.load %arg30[%c0_78, %c0_79] : memref<16x32xf32, #tpu.memory_space<vmem>>, vector<16x32xf32>
    tpu.vector_store %arg30[%c0_78, %c0_79], %211 {strides = array<i32>} : memref<16x32xf32, #tpu.memory_space<vmem>>, vector<16x32xf32>,
    %c0_80 = arith.constant 0 : index
    %c0_81 = arith.constant 0 : index
    %213 = vector.load %arg17[%c0_80, %c0_81] : memref<32x96xf32, #tpu.memory_space<vmem>>, vector<32x96xf32>
    %214 = arith.truncf %211 : vector<16x32xf32> to vector<16x32xbf16>
    %215 = arith.truncf %213 : vector<32x96xf32> to vector<32x96xbf16>
    %cst_82 = arith.constant dense<0.000000e+00> : vector<16x96xf32>
    %216 = tpu.matmul %214, %215, %cst_82 {dimension_numbers = #tpu.dot_dimension_numbers<[1], [0], [0], [1], [0, 0, 1, 1], [], []>} : vector<16x32xbf16>, vector<32x96xbf16>, vector<16x96xf32> -> vector<16x96xf32>
    %c0_83 = arith.constant 0 : index
    %c0_84 = arith.constant 0 : index
    %217 = vector.load %arg18[%c0_83, %c0_84] : memref<1x96xf32, #tpu.memory_space<vmem>>, vector<1x96xf32>
    %218 = vector.broadcast %217 : vector<1x96xf32> to vector<16x96xf32>
    %219 = arith.addf %216, %218 : vector<16x96xf32>
    %220 = vector.extract_strided_slice %219 {offsets = [0, 0], sizes = [16, 8], strides = [1, 1]} : vector<16x96xf32> to vector<16x8xf32>
    %cst_85 = arith.constant 0.353553385 : f32
    %221 = vector.broadcast %cst_85 : f32 to vector<16x8xf32>
    %222 = arith.mulf %220, %221 : vector<16x8xf32>
    %223 = vector.extract_strided_slice %219 {offsets = [0, 32], sizes = [16, 8], strides = [1, 1]} : vector<16x96xf32> to vector<16x8xf32>
    %224 = vector.extract_strided_slice %219 {offsets = [0, 64], sizes = [16, 8], strides = [1, 1]} : vector<16x96xf32> to vector<16x8xf32>
    %225 = arith.truncf %222 : vector<16x8xf32> to vector<16x8xbf16>
    %226 = arith.truncf %223 : vector<16x8xf32> to vector<16x8xbf16>
    %cst_86 = arith.constant dense<0.000000e+00> : vector<16x16xf32>
    %227 = tpu.matmul %225, %226, %cst_86 {dimension_numbers = #tpu.dot_dimension_numbers<[1], [1], [0], [0], [0, 0, 1, 0], [], []>} : vector<16x8xbf16>, vector<16x8xbf16>, vector<16x16xf32> -> vector<16x16xf32>
    %228 = arith.addf %227, %0 : vector<16x16xf32>
    %cst_87 = arith.constant dense<0xFF800000> : vector<16xf32>
    %229 = vector.multi_reduction <maximumf>, %228, %cst_87 [1] : vector<16x16xf32> to vector<16xf32>
    %230 = vector.shape_cast %229 : vector<16xf32> to vector<16x1xf32>
    %231 = vector.broadcast %230 : vector<16x1xf32> to vector<16x16xf32>
    %232 = arith.subf %228, %231 : vector<16x16xf32>
    %233 = math.exp %232 : vector<16x16xf32>
    %cst_88 = arith.constant dense<0.000000e+00> : vector<16xf32>
    %234 = vector.multi_reduction <add>, %233, %cst_88 [1] : vector<16x16xf32> to vector<16xf32>
    %235 = vector.shape_cast %234 : vector<16xf32> to vector<16x1xf32>
    %236 = tpu.reciprocal %235 {approx = true} : vector<16x1xf32> -> vector<16x1xf32>
    %237 = vector.broadcast %236 : vector<16x1xf32> to vector<16x16xf32>
    %238 = arith.mulf %233, %237 : vector<16x16xf32>
    %239 = arith.truncf %238 : vector<16x16xf32> to vector<16x16xbf16>
    %240 = arith.truncf %224 : vector<16x8xf32> to vector<16x8xbf16>
    %cst_89 = arith.constant dense<0.000000e+00> : vector<16x8xf32>
    %241 = tpu.matmul %239, %240, %cst_89 {dimension_numbers = #tpu.dot_dimension_numbers<[1], [0], [0], [1], [0, 0, 1, 1], [], []>} : vector<16x16xbf16>, vector<16x8xbf16>, vector<16x8xf32> -> vector<16x8xf32>
    %242 = vector.extract_strided_slice %219 {offsets = [0, 8], sizes = [16, 8], strides = [1, 1]} : vector<16x96xf32> to vector<16x8xf32>
    %cst_90 = arith.constant 0.353553385 : f32
    %243 = vector.broadcast %cst_90 : f32 to vector<16x8xf32>
    %244 = arith.mulf %242, %243 : vector<16x8xf32>
    %245 = vector.extract_strided_slice %219 {offsets = [0, 40], sizes = [16, 8], strides = [1, 1]} : vector<16x96xf32> to vector<16x8xf32>
    %246 = vector.extract_strided_slice %219 {offsets = [0, 72], sizes = [16, 8], strides = [1, 1]} : vector<16x96xf32> to vector<16x8xf32>
    %247 = arith.truncf %244 : vector<16x8xf32> to vector<16x8xbf16>
    %248 = arith.truncf %245 : vector<16x8xf32> to vector<16x8xbf16>
    %cst_91 = arith.constant dense<0.000000e+00> : vector<16x16xf32>
    %249 = tpu.matmul %247, %248, %cst_91 {dimension_numbers = #tpu.dot_dimension_numbers<[1], [1], [0], [0], [0, 0, 1, 0], [], []>} : vector<16x8xbf16>, vector<16x8xbf16>, vector<16x16xf32> -> vector<16x16xf32>
    %250 = arith.addf %249, %0 : vector<16x16xf32>
    %cst_92 = arith.constant dense<0xFF800000> : vector<16xf32>
    %251 = vector.multi_reduction <maximumf>, %250, %cst_92 [1] : vector<16x16xf32> to vector<16xf32>
    %252 = vector.shape_cast %251 : vector<16xf32> to vector<16x1xf32>
    %253 = vector.broadcast %252 : vector<16x1xf32> to vector<16x16xf32>
    %254 = arith.subf %250, %253 : vector<16x16xf32>
    %255 = math.exp %254 : vector<16x16xf32>
    %cst_93 = arith.constant dense<0.000000e+00> : vector<16xf32>
    %256 = vector.multi_reduction <add>, %255, %cst_93 [1] : vector<16x16xf32> to vector<16xf32>
    %257 = vector.shape_cast %256 : vector<16xf32> to vector<16x1xf32>
    %258 = tpu.reciprocal %257 {approx = true} : vector<16x1xf32> -> vector<16x1xf32>
    %259 = vector.broadcast %258 : vector<16x1xf32> to vector<16x16xf32>
    %260 = arith.mulf %255, %259 : vector<16x16xf32>
    %261 = arith.truncf %260 : vector<16x16xf32> to vector<16x16xbf16>
    %262 = arith.truncf %246 : vector<16x8xf32> to vector<16x8xbf16>
    %cst_94 = arith.constant dense<0.000000e+00> : vector<16x8xf32>
    %263 = tpu.matmul %261, %262, %cst_94 {dimension_numbers = #tpu.dot_dimension_numbers<[1], [0], [0], [1], [0, 0, 1, 1], [], []>} : vector<16x16xbf16>, vector<16x8xbf16>, vector<16x8xf32> -> vector<16x8xf32>
    %264 = vector.extract_strided_slice %219 {offsets = [0, 16], sizes = [16, 8], strides = [1, 1]} : vector<16x96xf32> to vector<16x8xf32>
    %cst_95 = arith.constant 0.353553385 : f32
    %265 = vector.broadcast %cst_95 : f32 to vector<16x8xf32>
    %266 = arith.mulf %264, %265 : vector<16x8xf32>
    %267 = vector.extract_strided_slice %219 {offsets = [0, 48], sizes = [16, 8], strides = [1, 1]} : vector<16x96xf32> to vector<16x8xf32>
    %268 = vector.extract_strided_slice %219 {offsets = [0, 80], sizes = [16, 8], strides = [1, 1]} : vector<16x96xf32> to vector<16x8xf32>
    %269 = arith.truncf %266 : vector<16x8xf32> to vector<16x8xbf16>
    %270 = arith.truncf %267 : vector<16x8xf32> to vector<16x8xbf16>
    %cst_96 = arith.constant dense<0.000000e+00> : vector<16x16xf32>
    %271 = tpu.matmul %269, %270, %cst_96 {dimension_numbers = #tpu.dot_dimension_numbers<[1], [1], [0], [0], [0, 0, 1, 0], [], []>} : vector<16x8xbf16>, vector<16x8xbf16>, vector<16x16xf32> -> vector<16x16xf32>
    %272 = arith.addf %271, %0 : vector<16x16xf32>
    %cst_97 = arith.constant dense<0xFF800000> : vector<16xf32>
    %273 = vector.multi_reduction <maximumf>, %272, %cst_97 [1] : vector<16x16xf32> to vector<16xf32>
    %274 = vector.shape_cast %273 : vector<16xf32> to vector<16x1xf32>
    %275 = vector.broadcast %274 : vector<16x1xf32> to vector<16x16xf32>
    %276 = arith.subf %272, %275 : vector<16x16xf32>
    %277 = math.exp %276 : vector<16x16xf32>
    %cst_98 = arith.constant dense<0.000000e+00> : vector<16xf32>
    %278 = vector.multi_reduction <add>, %277, %cst_98 [1] : vector<16x16xf32> to vector<16xf32>
    %279 = vector.shape_cast %278 : vector<16xf32> to vector<16x1xf32>
    %280 = tpu.reciprocal %279 {approx = true} : vector<16x1xf32> -> vector<16x1xf32>
    %281 = vector.broadcast %280 : vector<16x1xf32> to vector<16x16xf32>
    %282 = arith.mulf %277, %281 : vector<16x16xf32>
    %283 = arith.truncf %282 : vector<16x16xf32> to vector<16x16xbf16>
    %284 = arith.truncf %268 : vector<16x8xf32> to vector<16x8xbf16>
    %cst_99 = arith.constant dense<0.000000e+00> : vector<16x8xf32>
    %285 = tpu.matmul %283, %284, %cst_99 {dimension_numbers = #tpu.dot_dimension_numbers<[1], [0], [0], [1], [0, 0, 1, 1], [], []>} : vector<16x16xbf16>, vector<16x8xbf16>, vector<16x8xf32> -> vector<16x8xf32>
    %286 = vector.extract_strided_slice %219 {offsets = [0, 24], sizes = [16, 8], strides = [1, 1]} : vector<16x96xf32> to vector<16x8xf32>
    %cst_100 = arith.constant 0.353553385 : f32
    %287 = vector.broadcast %cst_100 : f32 to vector<16x8xf32>
    %288 = arith.mulf %286, %287 : vector<16x8xf32>
    %289 = vector.extract_strided_slice %219 {offsets = [0, 56], sizes = [16, 8], strides = [1, 1]} : vector<16x96xf32> to vector<16x8xf32>
    %290 = vector.extract_strided_slice %219 {offsets = [0, 88], sizes = [16, 8], strides = [1, 1]} : vector<16x96xf32> to vector<16x8xf32>
    %291 = arith.truncf %288 : vector<16x8xf32> to vector<16x8xbf16>
    %292 = arith.truncf %289 : vector<16x8xf32> to vector<16x8xbf16>
    %cst_101 = arith.constant dense<0.000000e+00> : vector<16x16xf32>
    %293 = tpu.matmul %291, %292, %cst_101 {dimension_numbers = #tpu.dot_dimension_numbers<[1], [1], [0], [0], [0, 0, 1, 0], [], []>} : vector<16x8xbf16>, vector<16x8xbf16>, vector<16x16xf32> -> vector<16x16xf32>
    %294 = arith.addf %293, %0 : vector<16x16xf32>
    %cst_102 = arith.constant dense<0xFF800000> : vector<16xf32>
    %295 = vector.multi_reduction <maximumf>, %294, %cst_102 [1] : vector<16x16xf32> to vector<16xf32>
    %296 = vector.shape_cast %295 : vector<16xf32> to vector<16x1xf32>
    %297 = vector.broadcast %296 : vector<16x1xf32> to vector<16x16xf32>
    %298 = arith.subf %294, %297 : vector<16x16xf32>
    %299 = math.exp %298 : vector<16x16xf32>
    %cst_103 = arith.constant dense<0.000000e+00> : vector<16xf32>
    %300 = vector.multi_reduction <add>, %299, %cst_103 [1] : vector<16x16xf32> to vector<16xf32>
    %301 = vector.shape_cast %300 : vector<16xf32> to vector<16x1xf32>
    %302 = tpu.reciprocal %301 {approx = true} : vector<16x1xf32> -> vector<16x1xf32>
    %303 = vector.broadcast %302 : vector<16x1xf32> to vector<16x16xf32>
    %304 = arith.mulf %299, %303 : vector<16x16xf32>
    %305 = arith.truncf %304 : vector<16x16xf32> to vector<16x16xbf16>
    %306 = arith.truncf %290 : vector<16x8xf32> to vector<16x8xbf16>
    %cst_104 = arith.constant dense<0.000000e+00> : vector<16x8xf32>
    %307 = tpu.matmul %305, %306, %cst_104 {dimension_numbers = #tpu.dot_dimension_numbers<[1], [0], [0], [1], [0, 0, 1, 1], [], []>} : vector<16x16xbf16>, vector<16x8xbf16>, vector<16x8xf32> -> vector<16x8xf32>
    %308 = tpu.concatenate %241, %263, %285, %307 in 1 : vector<16x8xf32>, vector<16x8xf32>, vector<16x8xf32>, vector<16x8xf32> -> vector<16x32xf32>
    %c0_105 = arith.constant 0 : index
    %c0_106 = arith.constant 0 : index
    %309 = vector.load %arg19[%c0_105, %c0_106] : memref<32x32xf32, #tpu.memory_space<vmem>>, vector<32x32xf32>
    %310 = arith.truncf %308 : vector<16x32xf32> to vector<16x32xbf16>
    %311 = arith.truncf %309 : vector<32x32xf32> to vector<32x32xbf16>
    %cst_107 = arith.constant dense<0.000000e+00> : vector<16x32xf32>
    %312 = tpu.matmul %310, %311, %cst_107 {dimension_numbers = #tpu.dot_dimension_numbers<[1], [0], [0], [1], [0, 0, 1, 1], [], []>} : vector<16x32xbf16>, vector<32x32xbf16>, vector<16x32xf32> -> vector<16x32xf32>
    %c0_108 = arith.constant 0 : index
    %c0_109 = arith.constant 0 : index
    %313 = vector.load %arg20[%c0_108, %c0_109] : memref<1x32xf32, #tpu.memory_space<vmem>>, vector<1x32xf32>
    %314 = vector.broadcast %313 : vector<1x32xf32> to vector<16x32xf32>
    %315 = arith.addf %312, %314 : vector<16x32xf32>
    %316 = arith.addf %315, %211 : vector<16x32xf32>
    %c0_110 = arith.constant 0 : index
    %c0_111 = arith.constant 0 : index
    %317 = vector.load %arg21[%c0_110, %c0_111] : memref<1x32xf32, #tpu.memory_space<vmem>>, vector<1x32xf32>
    %c0_112 = arith.constant 0 : index
    %c0_113 = arith.constant 0 : index
    %318 = vector.load %arg22[%c0_112, %c0_113] : memref<1x32xf32, #tpu.memory_space<vmem>>, vector<1x32xf32>
    %cst_114 = arith.constant dense<0.000000e+00> : vector<16xf32>
    %319 = vector.multi_reduction <add>, %316, %cst_114 [1] : vector<16x32xf32> to vector<16xf32>
    %320 = vector.shape_cast %319 : vector<16xf32> to vector<16x1xf32>
    %cst_115 = arith.constant 3.200000e+01 : f32
    %321 = vector.broadcast %cst_115 : f32 to vector<16x1xf32>
    %322 = arith.divf %320, %321 : vector<16x1xf32>
    %323 = vector.broadcast %322 : vector<16x1xf32> to vector<16x32xf32>
    %324 = arith.subf %316, %323 : vector<16x32xf32>
    %325 = arith.mulf %324, %324 : vector<16x32xf32>
    %cst_116 = arith.constant dense<0.000000e+00> : vector<16xf32>
    %326 = vector.multi_reduction <add>, %325, %cst_116 [1] : vector<16x32xf32> to vector<16xf32>
    %327 = vector.shape_cast %326 : vector<16xf32> to vector<16x1xf32>
    %cst_117 = arith.constant 3.200000e+01 : f32
    %328 = vector.broadcast %cst_117 : f32 to vector<16x1xf32>
    %329 = arith.divf %327, %328 : vector<16x1xf32>
    %330 = vector.broadcast %322 : vector<16x1xf32> to vector<16x32xf32>
    %331 = arith.subf %316, %330 : vector<16x32xf32>
    %cst_118 = arith.constant 9.99999974E-6 : f32
    %332 = vector.broadcast %cst_118 : f32 to vector<16x1xf32>
    %333 = arith.addf %329, %332 : vector<16x1xf32>
    %334 = math.rsqrt %333 : vector<16x1xf32>
    %335 = vector.broadcast %334 : vector<16x1xf32> to vector<16x32xf32>
    %336 = arith.mulf %331, %335 : vector<16x32xf32>
    %337 = vector.broadcast %317 : vector<1x32xf32> to vector<16x32xf32>
    %338 = arith.mulf %336, %337 : vector<16x32xf32>
    %339 = vector.broadcast %318 : vector<1x32xf32> to vector<16x32xf32>
    %340 = arith.addf %338, %339 : vector<16x32xf32>
    %c0_119 = arith.constant 0 : index
    %c0_120 = arith.constant 0 : index
    %341 = vector.load %arg23[%c0_119, %c0_120] : memref<32x128xf32, #tpu.memory_space<vmem>>, vector<32x128xf32>
    %342 = arith.truncf %340 : vector<16x32xf32> to vector<16x32xbf16>
    %343 = arith.truncf %341 : vector<32x128xf32> to vector<32x128xbf16>
    %cst_121 = arith.constant dense<0.000000e+00> : vector<16x128xf32>
    %344 = tpu.matmul %342, %343, %cst_121 {dimension_numbers = #tpu.dot_dimension_numbers<[1], [0], [0], [1], [0, 0, 1, 1], [], []>} : vector<16x32xbf16>, vector<32x128xbf16>, vector<16x128xf32> -> vector<16x128xf32>
    %c0_122 = arith.constant 0 : index
    %c0_123 = arith.constant 0 : index
    %345 = vector.load %arg24[%c0_122, %c0_123] : memref<1x128xf32, #tpu.memory_space<vmem>>, vector<1x128xf32>
    %346 = vector.broadcast %345 : vector<1x128xf32> to vector<16x128xf32>
    %347 = arith.addf %344, %346 : vector<16x128xf32>
    %cst_124 = arith.constant 5.000000e-01 : f32
    %348 = vector.broadcast %cst_124 : f32 to vector<16x128xf32>
    %349 = arith.mulf %348, %347 : vector<16x128xf32>
    %cst_125 = arith.constant 4.471500e-02 : f32
    %350 = vector.broadcast %cst_125 : f32 to vector<16x128xf32>
    %351 = arith.mulf %350, %347 : vector<16x128xf32>
    %352 = arith.mulf %351, %347 : vector<16x128xf32>
    %353 = arith.mulf %352, %347 : vector<16x128xf32>
    %354 = arith.addf %347, %353 : vector<16x128xf32>
    %cst_126 = arith.constant 0.797884583 : f32
    %355 = vector.broadcast %cst_126 : f32 to vector<16x128xf32>
    %356 = arith.mulf %355, %354 : vector<16x128xf32>
    %357 = math.tanh %356 : vector<16x128xf32>
    %cst_127 = arith.constant 1.000000e+00 : f32
    %358 = vector.broadcast %cst_127 : f32 to vector<16x128xf32>
    %359 = arith.addf %358, %357 : vector<16x128xf32>
    %360 = arith.mulf %349, %359 : vector<16x128xf32>
    %c0_128 = arith.constant 0 : index
    %c0_129 = arith.constant 0 : index
    %361 = vector.load %arg25[%c0_128, %c0_129] : memref<128x32xf32, #tpu.memory_space<vmem>>, vector<128x32xf32>
    %362 = arith.truncf %360 : vector<16x128xf32> to vector<16x128xbf16>
    %363 = arith.truncf %361 : vector<128x32xf32> to vector<128x32xbf16>
    %cst_130 = arith.constant dense<0.000000e+00> : vector<16x32xf32>
    %364 = tpu.matmul %362, %363, %cst_130 {dimension_numbers = #tpu.dot_dimension_numbers<[1], [0], [0], [1], [0, 0, 1, 1], [], []>} : vector<16x128xbf16>, vector<128x32xbf16>, vector<16x32xf32> -> vector<16x32xf32>
    %c0_131 = arith.constant 0 : index
    %c0_132 = arith.constant 0 : index
    %365 = vector.load %arg26[%c0_131, %c0_132] : memref<1x32xf32, #tpu.memory_space<vmem>>, vector<1x32xf32>
    %366 = vector.broadcast %365 : vector<1x32xf32> to vector<16x32xf32>
    %367 = arith.addf %364, %366 : vector<16x32xf32>
    %368 = arith.addf %367, %340 : vector<16x32xf32>
    %c0_133 = arith.constant 0 : index
    %c0_134 = arith.constant 0 : index
    %369 = vector.load %arg27[%c0_133, %c0_134] : memref<1x32xf32, #tpu.memory_space<vmem>>, vector<1x32xf32>
    %c0_135 = arith.constant 0 : index
    %c0_136 = arith.constant 0 : index
    %370 = vector.load %arg28[%c0_135, %c0_136] : memref<1x32xf32, #tpu.memory_space<vmem>>, vector<1x32xf32>
    %cst_137 = arith.constant dense<0.000000e+00> : vector<16xf32>
    %371 = vector.multi_reduction <add>, %368, %cst_137 [1] : vector<16x32xf32> to vector<16xf32>
    %372 = vector.shape_cast %371 : vector<16xf32> to vector<16x1xf32>
    %cst_138 = arith.constant 3.200000e+01 : f32
    %373 = vector.broadcast %cst_138 : f32 to vector<16x1xf32>
    %374 = arith.divf %372, %373 : vector<16x1xf32>
    %375 = vector.broadcast %374 : vector<16x1xf32> to vector<16x32xf32>
    %376 = arith.subf %368, %375 : vector<16x32xf32>
    %377 = arith.mulf %376, %376 : vector<16x32xf32>
    %cst_139 = arith.constant dense<0.000000e+00> : vector<16xf32>
    %378 = vector.multi_reduction <add>, %377, %cst_139 [1] : vector<16x32xf32> to vector<16xf32>
    %379 = vector.shape_cast %378 : vector<16xf32> to vector<16x1xf32>
    %cst_140 = arith.constant 3.200000e+01 : f32
    %380 = vector.broadcast %cst_140 : f32 to vector<16x1xf32>
    %381 = arith.divf %379, %380 : vector<16x1xf32>
    %382 = vector.broadcast %374 : vector<16x1xf32> to vector<16x32xf32>
    %383 = arith.subf %368, %382 : vector<16x32xf32>
    %cst_141 = arith.constant 9.99999974E-6 : f32
    %384 = vector.broadcast %cst_141 : f32 to vector<16x1xf32>
    %385 = arith.addf %381, %384 : vector<16x1xf32>
    %386 = math.rsqrt %385 : vector<16x1xf32>
    %387 = vector.broadcast %386 : vector<16x1xf32> to vector<16x32xf32>
    %388 = arith.mulf %383, %387 : vector<16x32xf32>
    %389 = vector.broadcast %369 : vector<1x32xf32> to vector<16x32xf32>
    %390 = arith.mulf %388, %389 : vector<16x32xf32>
    %391 = vector.broadcast %370 : vector<1x32xf32> to vector<16x32xf32>
    %392 = arith.addf %390, %391 : vector<16x32xf32>
    %c0_142 = arith.constant 0 : index
    %c0_143 = arith.constant 0 : index
    %393 = vector.load %arg31[%c0_142, %c0_143] : memref<16x32xf32, #tpu.memory_space<vmem>>, vector<16x32xf32>
    tpu.vector_store %arg31[%c0_142, %c0_143], %392 {strides = array<i32>} : memref<16x32xf32, #tpu.memory_space<vmem>>, vector<16x32xf32>,
    return
  }
}

</mosaic_0001>

<llo_original>
// kernel: accelerator_transformer_forward.1
$region0: #{accelerator_transformer_forward.1}
  #allocation0 [shape = 'u32[]', space=smem, size = 0x4, offset = 0x4, fixed_abs, tag = 'smem constant byte address 0x4 - core index']
  #allocation1 [shape = 'u32[144,128]{1,0:T(1,128)}', space=vmem, size = 0x12000, scoped, tag = 'internal scratch']
  %s0 = inlined_call_operand.smem [shape: u32[32], index: -1, kind: input, shape index: {}]
  %s1 = sld [smem:[%s0]]
  %s2 = scalar_lea.smem %s0, 1
  %s3 = sld [smem:[%s2]]
  %s4 = scalar_lea.smem %s0, 2
  %s5 = sld [smem:[%s4]]
  %s6 = scalar_lea.smem %s0, 3
  %s7 = sld [smem:[%s6]]
  %s8 = scalar_lea.smem %s0, 4
  %s9 = sld [smem:[%s8]]
  %s10 = scalar_lea.smem %s0, 5
  %s11 = sld [smem:[%s10]]
  %s12 = scalar_lea.smem %s0, 6
  %s13 = sld [smem:[%s12]]
  %s14 = scalar_lea.smem %s0, 7
  %s15 = sld [smem:[%s14]]
  %s16 = scalar_lea.smem %s0, 8
  %s17 = sld [smem:[%s16]]
  %s18 = scalar_lea.smem %s0, 9
  %s19 = sld [smem:[%s18]]
  %s20 = scalar_lea.smem %s0, 10
  %s21 = sld [smem:[%s20]]
  %s22 = scalar_lea.smem %s0, 11
  %s23 = sld [smem:[%s22]]
  %s24 = scalar_lea.smem %s0, 12
  %s25 = sld [smem:[%s24]]
  %s26 = scalar_lea.smem %s0, 13
  %s27 = sld [smem:[%s26]]
  %s28 = scalar_lea.smem %s0, 14
  %s29 = sld [smem:[%s28]]
  %s30 = scalar_lea.smem %s0, 15
  %s31 = sld [smem:[%s30]]
  %s32 = scalar_lea.smem %s0, 16
  %s33 = sld [smem:[%s32]]
  %s34 = scalar_lea.smem %s0, 17
  %s35 = sld [smem:[%s34]]
  %s36 = scalar_lea.smem %s0, 18
  %s37 = sld [smem:[%s36]]
  %s38 = scalar_lea.smem %s0, 19
  %s39 = sld [smem:[%s38]]
  %s40 = scalar_lea.smem %s0, 20
  %s41 = sld [smem:[%s40]]
  %s42 = scalar_lea.smem %s0, 21
  %s43 = sld [smem:[%s42]]
  %s44 = scalar_lea.smem %s0, 22
  %s45 = sld [smem:[%s44]]
  %s46 = scalar_lea.smem %s0, 23
  %s47 = sld [smem:[%s46]]
  %s48 = scalar_lea.smem %s0, 24
  %s49 = sld [smem:[%s48]]
  %s50 = scalar_lea.smem %s0, 25
  %s51 = sld [smem:[%s50]]
  %s52 = scalar_lea.smem %s0, 26
  %s53 = sld [smem:[%s52]]
  %s54 = scalar_lea.smem %s0, 27
  %s55 = sld [smem:[%s54]]
  %s56 = scalar_lea.smem %s0, 28
  %s57 = sld [smem:[%s56]]
  %s58 = scalar_lea.smem %s0, 29
  %s59 = sld [smem:[%s58]]
  %s60 = scalar_lea.smem %s0, 30
  %s61 = sld [smem:[%s60]]
  %s62 = scalar_lea.smem %s0, 31
  %s63 = sld [smem:[%s62]]
  %64 = xla_tuple %s59, %s61, %s63
  %s65 = sld [smem:[#allocation0]]
  $region142: #{accelerator_transformer_forward.1} parent=0
    _
  %s67 = ssub.s32 1, %s65
  %s68 = scalar_select 0, %s67, %s65
  // Predicated region
  $region2: #{accelerator_transformer_forward.1} parent=0 // pred_check
    _
  $region3: #{accelerator_transformer_forward.1} parent=0 // pred_check_branch
    %70 = sbr.rel (0) target = $region5
  $region4: #{accelerator_transformer_forward.1} parent=0 // pred_region
    _
  $region5: #{accelerator_transformer_forward.1} parent=0 // pred_fallthru
    _
  // Predicated region
  $region6: #{accelerator_transformer_forward.1} parent=0 // pred_check
    _
  $region7: #{accelerator_transformer_forward.1} parent=0 // pred_check_branch
    %72 = sbr.rel (0) target = $region9
  $region8: #{accelerator_transformer_forward.1} parent=0 // pred_region
    _
  $region9: #{accelerator_transformer_forward.1} parent=0 // pred_fallthru
    _
  // Predicated region
  $region10: #{accelerator_transformer_forward.1} parent=0 // pred_check
    _
  $region11: #{accelerator_transformer_forward.1} parent=0 // pred_check_branch
    %74 = sbr.rel (0) target = $region13
  $region12: #{accelerator_transformer_forward.1} parent=0 // pred_region
    _
  $region13: #{accelerator_transformer_forward.1} parent=0 // pred_fallthru
    _
  // Predicated region
  $region14: #{accelerator_transformer_forward.1} parent=0 // pred_check
    _
  $region15: #{accelerator_transformer_forward.1} parent=0 // pred_check_branch
    %76 = sbr.rel (0) target = $region17
  $region16: #{accelerator_transformer_forward.1} parent=0 // pred_region
    _
  $region17: #{accelerator_transformer_forward.1} parent=0 // pred_fallthru
    _
  // Predicated region
  $region18: #{accelerator_transformer_forward.1} parent=0 // pred_check
    _
  $region19: #{accelerator_transformer_forward.1} parent=0 // pred_check_branch
    %78 = sbr.rel (0) target = $region21
  $region20: #{accelerator_transformer_forward.1} parent=0 // pred_region
    _
  $region21: #{accelerator_transformer_forward.1} parent=0 // pred_fallthru
    _
  // Predicated region
  $region22: #{accelerator_transformer_forward.1} parent=0 // pred_check
    _
  $region23: #{accelerator_transformer_forward.1} parent=0 // pred_check_branch
    %80 = sbr.rel (0) target = $region25
  $region24: #{accelerator_transformer_forward.1} parent=0 // pred_region
    _
  $region25: #{accelerator_transformer_forward.1} parent=0 // pred_fallthru
    _
  // Predicated region
  $region26: #{accelerator_transformer_forward.1} parent=0 // pred_check
    _
  $region27: #{accelerator_transformer_forward.1} parent=0 // pred_check_branch
    %82 = sbr.rel (0) target = $region29
  $region28: #{accelerator_transformer_forward.1} parent=0 // pred_region
    _
  $region29: #{accelerator_transformer_forward.1} parent=0 // pred_fallthru
    _
  // Predicated region
  $region30: #{accelerator_transformer_forward.1} parent=0 // pred_check
    _
  $region31: #{accelerator_transformer_forward.1} parent=0 // pred_check_branch
    %84 = sbr.rel (0) target = $region33
  $region32: #{accelerator_transformer_forward.1} parent=0 // pred_region
    _
  $region33: #{accelerator_transformer_forward.1} parent=0 // pred_fallthru
    _
  // Predicated region
  $region34: #{accelerator_transformer_forward.1} parent=0 // pred_check
    _
  $region35: #{accelerator_transformer_forward.1} parent=0 // pred_check_branch
    %86 = sbr.rel (0) target = $region37
  $region36: #{accelerator_transformer_forward.1} parent=0 // pred_region
    _
  $region37: #{accelerator_transformer_forward.1} parent=0 // pred_fallthru
    _
  // Predicated region
  $region38: #{accelerator_transformer_forward.1} parent=0 // pred_check
    _
  $region39: #{accelerator_transformer_forward.1} parent=0 // pred_check_branch
    %88 = sbr.rel (0) target = $region41
  $region40: #{accelerator_transformer_forward.1} parent=0 // pred_region
    _
  $region41: #{accelerator_transformer_forward.1} parent=0 // pred_fallthru
    _
  // Predicated region
  $region42: #{accelerator_transformer_forward.1} parent=0 // pred_check
    _
  $region43: #{accelerator_transformer_forward.1} parent=0 // pred_check_branch
    %90 = sbr.rel (0) target = $region45
  $region44: #{accelerator_transformer_forward.1} parent=0 // pred_region
    _
  $region45: #{accelerator_transformer_forward.1} parent=0 // pred_fallthru
    _
  // Predicated region
  $region46: #{accelerator_transformer_forward.1} parent=0 // pred_check
    _
  $region47: #{accelerator_transformer_forward.1} parent=0 // pred_check_branch
    %92 = sbr.rel (0) target = $region49
  $region48: #{accelerator_transformer_forward.1} parent=0 // pred_region
    _
  $region49: #{accelerator_transformer_forward.1} parent=0 // pred_fallthru
    _
  // Predicated region
  $region50: #{accelerator_transformer_forward.1} parent=0 // pred_check
    _
  $region51: #{accelerator_transformer_forward.1} parent=0 // pred_check_branch
    %94 = sbr.rel (0) target = $region53
  $region52: #{accelerator_transformer_forward.1} parent=0 // pred_region
    _
  $region53: #{accelerator_transformer_forward.1} parent=0 // pred_fallthru
    _
  // Predicated region
  $region54: #{accelerator_transformer_forward.1} parent=0 // pred_check
    _
  $region55: #{accelerator_transformer_forward.1} parent=0 // pred_check_branch
    %96 = sbr.rel (0) target = $region57
  $region56: #{accelerator_transformer_forward.1} parent=0 // pred_region
    _
  $region57: #{accelerator_transformer_forward.1} parent=0 // pred_fallthru
    _
  // Predicated region
  $region58: #{accelerator_transformer_forward.1} parent=0 // pred_check
    _
  $region59: #{accelerator_transformer_forward.1} parent=0 // pred_check_branch
    %98 = sbr.rel (0) target = $region61
  $region60: #{accelerator_transformer_forward.1} parent=0 // pred_region
    _
  $region61: #{accelerator_transformer_forward.1} parent=0 // pred_fallthru
    _
  // Predicated region
  $region62: #{accelerator_transformer_forward.1} parent=0 // pred_check
    _
  $region63: #{accelerator_transformer_forward.1} parent=0 // pred_check_branch
    %100 = sbr.rel (0) target = $region65
  $region64: #{accelerator_transformer_forward.1} parent=0 // pred_region
    _
  $region65: #{accelerator_transformer_forward.1} parent=0 // pred_fallthru
    _
  // Predicated region
  $region66: #{accelerator_transformer_forward.1} parent=0 // pred_check
    _
  $region67: #{accelerator_transformer_forward.1} parent=0 // pred_check_branch
    %102 = sbr.rel (0) target = $region69
  $region68: #{accelerator_transformer_forward.1} parent=0 // pred_region
    _
  $region69: #{accelerator_transformer_forward.1} parent=0 // pred_fallthru
    _
  // Predicated region
  $region70: #{accelerator_transformer_forward.1} parent=0 // pred_check
    _
  $region71: #{accelerator_transformer_forward.1} parent=0 // pred_check_branch
    %104 = sbr.rel (0) target = $region73
  $region72: #{accelerator_transformer_forward.1} parent=0 // pred_region
    _
  $region73: #{accelerator_transformer_forward.1} parent=0 // pred_fallthru
    _
  // Predicated region
  $region74: #{accelerator_transformer_forward.1} parent=0 // pred_check
    _
  $region75: #{accelerator_transformer_forward.1} parent=0 // pred_check_branch
    %106 = sbr.rel (0) target = $region77
  $region76: #{accelerator_transformer_forward.1} parent=0 // pred_region
    _
  $region77: #{accelerator_transformer_forward.1} parent=0 // pred_fallthru
    _
  // Predicated region
  $region78: #{accelerator_transformer_forward.1} parent=0 // pred_check
    _
  $region79: #{accelerator_transformer_forward.1} parent=0 // pred_check_branch
    %108 = sbr.rel (0) target = $region81
  $region80: #{accelerator_transformer_forward.1} parent=0 // pred_region
    _
  $region81: #{accelerator_transformer_forward.1} parent=0 // pred_fallthru
    _
  // Predicated region
  $region82: #{accelerator_transformer_forward.1} parent=0 // pred_check
    _
  $region83: #{accelerator_transformer_forward.1} parent=0 // pred_check_branch
    %110 = sbr.rel (0) target = $region85
  $region84: #{accelerator_transformer_forward.1} parent=0 // pred_region
    _
  $region85: #{accelerator_transformer_forward.1} parent=0 // pred_fallthru
    _
  // Predicated region
  $region86: #{accelerator_transformer_forward.1} parent=0 // pred_check
    _
  $region87: #{accelerator_transformer_forward.1} parent=0 // pred_check_branch
    %112 = sbr.rel (0) target = $region89
  $region88: #{accelerator_transformer_forward.1} parent=0 // pred_region
    _
  $region89: #{accelerator_transformer_forward.1} parent=0 // pred_fallthru
    _
  // Predicated region
  $region90: #{accelerator_transformer_forward.1} parent=0 // pred_check
    _
  $region91: #{accelerator_transformer_forward.1} parent=0 // pred_check_branch
    %114 = sbr.rel (0) target = $region93
  $region92: #{accelerator_transformer_forward.1} parent=0 // pred_region
    _
  $region93: #{accelerator_transformer_forward.1} parent=0 // pred_fallthru
    _
  // Predicated region
  $region94: #{accelerator_transformer_forward.1} parent=0 // pred_check
    _
  $region95: #{accelerator_transformer_forward.1} parent=0 // pred_check_branch
    %116 = sbr.rel (0) target = $region97
  $region96: #{accelerator_transformer_forward.1} parent=0 // pred_region
    _
  $region97: #{accelerator_transformer_forward.1} parent=0 // pred_fallthru
    _
  // Predicated region
  $region98: #{accelerator_transformer_forward.1} parent=0 // pred_check
    _
  $region99: #{accelerator_transformer_forward.1} parent=0 // pred_check_branch
    %118 = sbr.rel (0) target = $region101
  $region100: #{accelerator_transformer_forward.1} parent=0 // pred_region
    _
  $region101: #{accelerator_transformer_forward.1} parent=0 // pred_fallthru
    _
  // Predicated region
  $region102: #{accelerator_transformer_forward.1} parent=0 // pred_check
    _
  $region103: #{accelerator_transformer_forward.1} parent=0 // pred_check_branch
    %120 = sbr.rel (0) target = $region105
  $region104: #{accelerator_transformer_forward.1} parent=0 // pred_region
    _
  $region105: #{accelerator_transformer_forward.1} parent=0 // pred_fallthru
    _
  // Predicated region
  $region106: #{accelerator_transformer_forward.1} parent=0 // pred_check
    _
  $region107: #{accelerator_transformer_forward.1} parent=0 // pred_check_branch
    %122 = sbr.rel (0) target = $region109
  $region108: #{accelerator_transformer_forward.1} parent=0 // pred_region
    _
  $region109: #{accelerator_transformer_forward.1} parent=0 // pred_fallthru
    _
  // Predicated region
  $region110: #{accelerator_transformer_forward.1} parent=0 // pred_check
    _
  $region111: #{accelerator_transformer_forward.1} parent=0 // pred_check_branch
    %124 = sbr.rel (0) target = $region113
  $region112: #{accelerator_transformer_forward.1} parent=0 // pred_region
    _
  $region113: #{accelerator_transformer_forward.1} parent=0 // pred_fallthru
    _
  // Predicated region
  $region114: #{accelerator_transformer_forward.1} parent=0 // pred_check
    _
  $region115: #{accelerator_transformer_forward.1} parent=0 // pred_check_branch
    %126 = sbr.rel (0) target = $region117
  $region116: #{accelerator_transformer_forward.1} parent=0 // pred_region
    _
  $region117: #{accelerator_transformer_forward.1} parent=0 // pred_fallthru
    _
  %v128 = vld [vmem:[%s5] sm:$0xff]
  %v129 = vld [vmem:[%s5 + $0x8] sm:$0xff]
  %v130 = vld [vmem:[%s1] sm:$0xff]
  %v131 = vld [vmem:[%s1 + $0x8] sm:$0xff]
  %v132 = vld [vmem:[%s7] sm:$0x1]
  %v133 = vld [vmem:[%s9] sm:$0x1]
  %vm134 = vcmask 261120
  %v135 = vsel %vm134, %v130, 0.0
  %136 = vadd.xlane.f32.xlu0 %v135
  %v137 = vpop.xlane.xlu0 %136
  %v138 = vsel %vm134, %v131, 0.0
  %139 = vadd.xlane.f32.xlu0 %v138
  %v140 = vpop.xlane.xlu0 %139
  %v141 = vrcp.pop 32.0
  %v142 = vmul.f32 %v137, %v141
  %v143 = vmul.f32 %v140, %v141
  %v144 = vsub.f32 %v130, %v142
  %v145 = vsub.f32 %v131, %v143
  %v146 = vmul.f32 %v144, %v144
  %v147 = vmul.f32 %v145, %v145
  %v148 = vsel %vm134, %v146, 0.0
  %149 = vadd.xlane.f32.xlu0 %v148
  %v150 = vpop.xlane.xlu0 %149
  %v151 = vsel %vm134, %v147, 0.0
  %152 = vadd.xlane.f32.xlu0 %v151
  %v153 = vpop.xlane.xlu0 %152
  %v154 = vmul.f32 %v150, %v141
  %v155 = vmul.f32 %v153, %v141
  %v156 = vadd.f32 %v154, 1e-05
  %v157 = vadd.f32 %v155, 1e-05
  %v158 = vrsqrt.pop %v156
  %v159 = vrsqrt.pop %v157
  %v160 = vmul.f32 %v144, %v158
  %v161 = vmul.f32 %v145, %v159
  %v163 = vlaneseq
  %v164 = vshrl.u32 %v163, 7
  %v165 = vsub.s32 0, %v164
  %v166 = vrot.slane %v132, %v165
  %v168 = vmul.f32 %v160, %v166
  %v169 = vmul.f32 %v161, %v166
  %v171 = vlaneseq
  %v172 = vshrl.u32 %v171, 7
  %v173 = vsub.s32 0, %v172
  %v174 = vrot.slane %v133, %v173
  %v176 = vadd.f32 %v168, %v174
  %v177 = vadd.f32 %v169, %v174
  %v178 = vld [vmem:[%s3] sm:$0xff]
  %v179 = vld [vmem:[%s3 + $0x8] sm:$0xff]
  %v180 = vsub.f32 1.0, %v178
  %v181 = vsub.f32 1.0, %v179
  %183 = vset.pattern.permute.xlu0 0
  %184 = vperm.xlu0 %183, %v180
  %v185 = vpop.permute.xlu0 %184
  %188 = vset.pattern.permute.xlu0 0
  %189 = vperm.xlu0 %188, %v181
  %v190 = vpop.permute.xlu0 %189
  %v192 = vmul.f32 %v176, %v185
  %v193 = vmul.f32 %v177, %v190
  %194 = vst.msk [vmem:[%s59] sm:$0xff] %vm134, %v192
  %195 = vst.msk [vmem:[%s59 + $0x8] sm:$0xff] %vm134, %v193
  %v196 = vld [vmem:[%s11] sm:$0xff]
  %v197 = vld [vmem:[%s11 + $0x8] sm:$0xff]
  %v198 = vld [vmem:[%s11 + $0x10] sm:$0xff]
  %v199 = vld [vmem:[%s11 + $0x18] sm:$0xff]
  %v200 = vpack.c.bf16 %v193, %v192
  %v201 = vpack.c.bf16 %v197, %v196
  %v202 = vpack.c.bf16 %v199, %v198
  %v203 = vld [vmem:[%s13] sm:$0x1]
  %v205 = vlaneseq
  %v206 = vshrl.u32 %v205, 7
  %v207 = vsub.s32 0, %v206
  %v208 = vrot.slane %v203, %v207
  %v211 = vsel %vm134, %v200, 0
  %213 = vmatprep.subr.bf16.mxu0 0
  %214 = vmatpush1.bf16.msra.mxu0 0
  %215 = vmatprep.subr.bf16.mxu0 0
  %216 = vmatpush1.bf16.msra.mxu0 0
  %217 = vmatprep.subr.bf16.mxu0 0
  %218 = vmatpush1.bf16.msra.mxu0 0
  %219 = vmatprep.subr.bf16.mxu0 0
  %220 = vmatpush1.bf16.msra.mxu0 0
  %221 = vmatprep.subr.bf16.mxu0 0
  %222 = vmatpush1.bf16.msra.mxu0 0
  %223 = vmatprep.subr.bf16.mxu0 0
  %224 = vmatpush1.bf16.msra.mxu0 0
  %225 = vmatprep.subr.bf16.mxu0 0
  %226 = vmatpush1.bf16.msra.mxu0 %v202
  %227 = vmatprep.subr.bf16.mxu0 0
  %228 = vmatpush1.bf16.msra.mxu0 %v201
  %229 = vmatprep.subr.bf16.mxu0 0
  %230 = vmatpush2.bf16.msra.mxu0 0
  %231 = vmatprep.subr.bf16.mxu0 0
  %232 = vmatpush2.bf16.msra.mxu0 0
  %233 = vmatprep.subr.bf16.mxu0 0
  %234 = vmatpush2.bf16.msra.mxu0 0
  %235 = vmatprep.subr.bf16.mxu0 0
  %236 = vmatpush2.bf16.msra.mxu0 0
  %237 = vmatprep.subr.bf16.mxu0 0
  %238 = vmatpush2.bf16.msra.mxu0 0
  %239 = vmatprep.subr.bf16.mxu0 0
  %240 = vmatpush2.bf16.msra.mxu0 0
  %241 = vmatprep.subr.bf16.mxu0 0
  %242 = vmatpush2.bf16.msra.mxu0 0
  %243 = vmatprep.subr.bf16.mxu0 0
  %244 = vmatpush2.bf16.msra.mxu0 0
  %245 = vmatprep.mubr.bf16.mxu0 0
  %246 = vmatmul.mubr.bf16.gmra.mxu0 %v211
  %v247 = vpop.f32.mrf.mxu0
  %v248 = vadd.f32 %v208, %v247
  %v249 = vpop.f32.mrf.mxu0
  %v250 = vpop.f32.mrf.mxu0
  %v251 = vadd.f32 %v208, %v250
  %v252 = vpop.f32.mrf.mxu0
  %253 = vdwg.mxu0
  %v254 = vmul.f32 %v248, 0.35355338
  %v255 = vmul.f32 %v251, 0.35355338
  %v256 = vpack.c.bf16 %v255, %v254
  %v257 = vpack.c.bf16 %v251, %v248
  %259 = vrot.lane.b32.xlu0 %v257, 96
  %v260 = vpop.permute.xlu0 %259
  %vm261 = vcmask 64512
  %v263 = vsel %vm261, %v256, 0
  %v266 = vsel %vm261, %v260, 0
  %268 = vmatprep.subr.bf16.mxu0 0
  %269 = vmatpush1.bf16.xpose.msra.mxu0 0
  %270 = vmatprep.subr.bf16.mxu0 0
  %271 = vmatpush1.bf16.xpose.msra.mxu0 0
  %272 = vmatprep.subr.bf16.mxu0 0
  %273 = vmatpush1.bf16.xpose.msra.mxu0 0
  %274 = vmatprep.subr.bf16.mxu0 0
  %275 = vmatpush1.bf16.xpose.msra.mxu0 0
  %276 = vmatprep.subr.bf16.mxu0 0
  %277 = vmatpush1.bf16.xpose.msra.mxu0 0
  %278 = vmatprep.subr.bf16.mxu0 0
  %279 = vmatpush1.bf16.xpose.msra.mxu0 0
  %280 = vmatprep.subr.bf16.mxu0 0
  %281 = vmatpush1.bf16.xpose.msra.mxu0 0
  %282 = vmatprep.subr.bf16.mxu0 0
  %283 = vmatpush1.bf16.xpose.msra.mxu0 %v266
  %284 = vmatprep.subr.bf16.mxu0 0
  %285 = vmatpush2.bf16.xpose.msra.mxu0 0
  %286 = vmatprep.subr.bf16.mxu0 0
  %287 = vmatpush2.bf16.xpose.msra.mxu0 0
  %288 = vmatprep.subr.bf16.mxu0 0
  %289 = vmatpush2.bf16.xpose.msra.mxu0 0
  %290 = vmatprep.subr.bf16.mxu0 0
  %291 = vmatpush2.bf16.xpose.msra.mxu0 0
  %292 = vmatprep.subr.bf16.mxu0 0
  %293 = vmatpush2.bf16.xpose.msra.mxu0 0
  %294 = vmatprep.subr.bf16.mxu0 0
  %295 = vmatpush2.bf16.xpose.msra.mxu0 0
  %296 = vmatprep.subr.bf16.mxu0 0
  %297 = vmatpush2.bf16.xpose.msra.mxu0 0
  %298 = vmatprep.subr.bf16.mxu0 0
  %299 = vmatpush2.bf16.xpose.msra.mxu0 0
  %300 = vmatprep.mubr.bf16.mxu0 0
  %301 = vmatmul.mubr.bf16.gmra.mxu0 %v263
  %v302 = vpop.f32.mrf.mxu0
  %v303 = vadd.f32 %v128, %v302
  %v304 = vpop.f32.mrf.mxu0
  %v305 = vpop.f32.mrf.mxu0
  %v306 = vadd.f32 %v129, %v305
  %v307 = vpop.f32.mrf.mxu0
  %308 = vdwg.mxu0
  %vm309 = vcmask 130048
  %v310 = vsel %vm309, %v303, -inf
  %311 = vmax.xlane.f32.xlu0 %v310
  %v312 = vpop.xlane.xlu0 %311
  %v313 = vsel %vm309, %v306, -inf
  %314 = vmax.xlane.f32.xlu0 %v313
  %v315 = vpop.xlane.xlu0 %314
  %v316 = vsub.f32 %v303, %v312
  %v317 = vsub.f32 %v306, %v315
  %v318 = vmul.f32 %v316, 1.442695
  %v319 = vpow.pop %v318
  %v320 = vmul.f32 %v317, 1.442695
  %v321 = vpow.pop %v320
  %v322 = vsel %vm309, %v319, 0.0
  %323 = vadd.xlane.f32.xlu0 %v322
  %v324 = vpop.xlane.xlu0 %323
  %v325 = vsel %vm309, %v321, 0.0
  %326 = vadd.xlane.f32.xlu0 %v325
  %v327 = vpop.xlane.xlu0 %326
  %v328 = vrcp.pop %v324
  %v329 = vrcp.pop %v327
  %v330 = vmul.f32 %v319, %v328
  %v331 = vmul.f32 %v321, %v329
  %v332 = vpack.c.bf16 %v331, %v330
  %333 = vrot.lane.b32.xlu0 %v257, 64
  %v334 = vpop.permute.xlu0 %333
  %v337 = vsel %vm309, %v332, 0
  %339 = vmatprep.subr.bf16.mxu0 0
  %340 = vmatpush1.bf16.msra.mxu0 0
  %341 = vmatprep.subr.bf16.mxu0 0
  %342 = vmatpush1.bf16.msra.mxu0 0
  %343 = vmatprep.subr.bf16.mxu0 0
  %344 = vmatpush1.bf16.msra.mxu0 0
  %345 = vmatprep.subr.bf16.mxu0 0
  %346 = vmatpush1.bf16.msra.mxu0 0
  %347 = vmatprep.subr.bf16.mxu0 0
  %348 = vmatpush1.bf16.msra.mxu0 0
  %349 = vmatprep.subr.bf16.mxu0 0
  %350 = vmatpush1.bf16.msra.mxu0 0
  %351 = vmatprep.subr.bf16.mxu0 0
  %352 = vmatpush1.bf16.msra.mxu0 0
  %353 = vmatprep.subr.bf16.mxu0 0
  %354 = vmatpush1.bf16.msra.mxu0 %v334
  %355 = vmatprep.subr.bf16.mxu0 0
  %356 = vmatpush2.bf16.msra.mxu0 0
  %357 = vmatprep.subr.bf16.mxu0 0
  %358 = vmatpush2.bf16.msra.mxu0 0
  %359 = vmatprep.subr.bf16.mxu0 0
  %360 = vmatpush2.bf16.msra.mxu0 0
  %361 = vmatprep.subr.bf16.mxu0 0
  %362 = vmatpush2.bf16.msra.mxu0 0
  %363 = vmatprep.subr.bf16.mxu0 0
  %364 = vmatpush2.bf16.msra.mxu0 0
  %365 = vmatprep.subr.bf16.mxu0 0
  %366 = vmatpush2.bf16.msra.mxu0 0
  %367 = vmatprep.subr.bf16.mxu0 0
  %368 = vmatpush2.bf16.msra.mxu0 0
  %369 = vmatprep.subr.bf16.mxu0 0
  %370 = vmatpush2.bf16.msra.mxu0 0
  %371 = vmatprep.mubr.bf16.mxu0 0
  %372 = vmatmul.mubr.bf16.gmra.mxu0 %v337
  %v373 = vpop.f32.mrf.mxu0
  %v374 = vadd.f32 0.0, %v373
  %v375 = vpop.f32.mrf.mxu0
  %v376 = vpop.f32.mrf.mxu0
  %v377 = vadd.f32 0.0, %v376
  %v378 = vpop.f32.mrf.mxu0
  %379 = vdwg.mxu0
  %381 = vrot.lane.b32.xlu0 %v256, 120
  %v382 = vpop.permute.xlu0 %381
  %383 = vrot.lane.b32.xlu0 %v257, 88
  %v384 = vpop.permute.xlu0 %383
  %v386 = vsel %vm261, %v382, 0
  %v389 = vsel %vm261, %v384, 0
  %391 = vmatprep.subr.bf16.mxu0 0
  %392 = vmatpush1.bf16.xpose.msra.mxu0 0
  %393 = vmatprep.subr.bf16.mxu0 0
  %394 = vmatpush1.bf16.xpose.msra.mxu0 0
  %395 = vmatprep.subr.bf16.mxu0 0
  %396 = vmatpush1.bf16.xpose.msra.mxu0 0
  %397 = vmatprep.subr.bf16.mxu0 0
  %398 = vmatpush1.bf16.xpose.msra.mxu0 0
  %399 = vmatprep.subr.bf16.mxu0 0
  %400 = vmatpush1.bf16.xpose.msra.mxu0 0
  %401 = vmatprep.subr.bf16.mxu0 0
  %402 = vmatpush1.bf16.xpose.msra.mxu0 0
  %403 = vmatprep.subr.bf16.mxu0 0
  %404 = vmatpush1.bf16.xpose.msra.mxu0 0
  %405 = vmatprep.subr.bf16.mxu0 0
  %406 = vmatpush1.bf16.xpose.msra.mxu0 %v389
  %407 = vmatprep.subr.bf16.mxu0 0
  %408 = vmatpush2.bf16.xpose.msra.mxu0 0
  %409 = vmatprep.subr.bf16.mxu0 0
  %410 = vmatpush2.bf16.xpose.msra.mxu0 0
  %411 = vmatprep.subr.bf16.mxu0 0
  %412 = vmatpush2.bf16.xpose.msra.mxu0 0
  %413 = vmatprep.subr.bf16.mxu0 0
  %414 = vmatpush2.bf16.xpose.msra.mxu0 0
  %415 = vmatprep.subr.bf16.mxu0 0
  %416 = vmatpush2.bf16.xpose.msra.mxu0 0
  %417 = vmatprep.subr.bf16.mxu0 0
  %418 = vmatpush2.bf16.xpose.msra.mxu0 0
  %419 = vmatprep.subr.bf16.mxu0 0
  %420 = vmatpush2.bf16.xpose.msra.mxu0 0
  %421 = vmatprep.subr.bf16.mxu0 0
  %422 = vmatpush2.bf16.xpose.msra.mxu0 0
  %423 = vmatprep.mubr.bf16.mxu0 0
  %424 = vmatmul.mubr.bf16.gmra.mxu0 %v386
  %v425 = vpop.f32.mrf.mxu0
  %v426 = vadd.f32 %v128, %v425
  %v427 = vpop.f32.mrf.mxu0
  %v428 = vpop.f32.mrf.mxu0
  %v429 = vadd.f32 %v129, %v428
  %v430 = vpop.f32.mrf.mxu0
  %431 = vdwg.mxu0
  %v432 = vsel %vm309, %v426, -inf
  %433 = vmax.xlane.f32.xlu0 %v432
  %v434 = vpop.xlane.xlu0 %433
  %v435 = vsel %vm309, %v429, -inf
  %436 = vmax.xlane.f32.xlu0 %v435
  %v437 = vpop.xlane.xlu0 %436
  %v438 = vsub.f32 %v426, %v434
  %v439 = vsub.f32 %v429, %v437
  %v440 = vmul.f32 %v438, 1.442695
  %v441 = vpow.pop %v440
  %v442 = vmul.f32 %v439, 1.442695
  %v443 = vpow.pop %v442
  %v444 = vsel %vm309, %v441, 0.0
  %445 = vadd.xlane.f32.xlu0 %v444
  %v446 = vpop.xlane.xlu0 %445
  %v447 = vsel %vm309, %v443, 0.0
  %448 = vadd.xlane.f32.xlu0 %v447
  %v449 = vpop.xlane.xlu0 %448
  %v450 = vrcp.pop %v446
  %v451 = vrcp.pop %v449
  %v452 = vmul.f32 %v441, %v450
  %v453 = vmul.f32 %v443, %v451
  %v454 = vpack.c.bf16 %v453, %v452
  %455 = vrot.lane.b32.xlu0 %v257, 56
  %v456 = vpop.permute.xlu0 %455
  %v459 = vsel %vm309, %v454, 0
  %461 = vmatprep.subr.bf16.mxu0 0
  %462 = vmatpush1.bf16.msra.mxu0 0
  %463 = vmatprep.subr.bf16.mxu0 0
  %464 = vmatpush1.bf16.msra.mxu0 0
  %465 = vmatprep.subr.bf16.mxu0 0
  %466 = vmatpush1.bf16.msra.mxu0 0
  %467 = vmatprep.subr.bf16.mxu0 0
  %468 = vmatpush1.bf16.msra.mxu0 0
  %469 = vmatprep.subr.bf16.mxu0 0
  %470 = vmatpush1.bf16.msra.mxu0 0
  %471 = vmatprep.subr.bf16.mxu0 0
  %472 = vmatpush1.bf16.msra.mxu0 0
  %473 = vmatprep.subr.bf16.mxu0 0
  %474 = vmatpush1.bf16.msra.mxu0 0
  %475 = vmatprep.subr.bf16.mxu0 0
  %476 = vmatpush1.bf16.msra.mxu0 %v456
  %477 = vmatprep.subr.bf16.mxu0 0
  %478 = vmatpush2.bf16.msra.mxu0 0
  %479 = vmatprep.subr.bf16.mxu0 0
  %480 = vmatpush2.bf16.msra.mxu0 0
  %481 = vmatprep.subr.bf16.mxu0 0
  %482 = vmatpush2.bf16.msra.mxu0 0
  %483 = vmatprep.subr.bf16.mxu0 0
  %484 = vmatpush2.bf16.msra.mxu0 0
  %485 = vmatprep.subr.bf16.mxu0 0
  %486 = vmatpush2.bf16.msra.mxu0 0
  %487 = vmatprep.subr.bf16.mxu0 0
  %488 = vmatpush2.bf16.msra.mxu0 0
  %489 = vmatprep.subr.bf16.mxu0 0
  %490 = vmatpush2.bf16.msra.mxu0 0
  %491 = vmatprep.subr.bf16.mxu0 0
  %492 = vmatpush2.bf16.msra.mxu0 0
  %493 = vmatprep.mubr.bf16.mxu0 0
  %494 = vmatmul.mubr.bf16.gmra.mxu0 %v459
  %v495 = vpop.f32.mrf.mxu0
  %v496 = vadd.f32 0.0, %v495
  %v497 = vpop.f32.mrf.mxu0
  %v498 = vpop.f32.mrf.mxu0
  %v499 = vadd.f32 0.0, %v498
  %v500 = vpop.f32.mrf.mxu0
  %501 = vdwg.mxu0
  %502 = vrot.lane.b32.xlu0 %v256, 112
  %v503 = vpop.permute.xlu0 %502
  %504 = vrot.lane.b32.xlu0 %v257, 80
  %v505 = vpop.permute.xlu0 %504
  %v507 = vsel %vm261, %v503, 0
  %v510 = vsel %vm261, %v505, 0
  %512 = vmatprep.subr.bf16.mxu0 0
  %513 = vmatpush1.bf16.xpose.msra.mxu0 0
  %514 = vmatprep.subr.bf16.mxu0 0
  %515 = vmatpush1.bf16.xpose.msra.mxu0 0
  %516 = vmatprep.subr.bf16.mxu0 0
  %517 = vmatpush1.bf16.xpose.msra.mxu0 0
  %518 = vmatprep.subr.bf16.mxu0 0
  %519 = vmatpush1.bf16.xpose.msra.mxu0 0
  %520 = vmatprep.subr.bf16.mxu0 0
  %521 = vmatpush1.bf16.xpose.msra.mxu0 0
  %522 = vmatprep.subr.bf16.mxu0 0
  %523 = vmatpush1.bf16.xpose.msra.mxu0 0
  %524 = vmatprep.subr.bf16.mxu0 0
  %525 = vmatpush1.bf16.xpose.msra.mxu0 0
  %526 = vmatprep.subr.bf16.mxu0 0
  %527 = vmatpush1.bf16.xpose.msra.mxu0 %v510
  %528 = vmatprep.subr.bf16.mxu0 0
  %529 = vmatpush2.bf16.xpose.msra.mxu0 0
  %530 = vmatprep.subr.bf16.mxu0 0
  %531 = vmatpush2.bf16.xpose.msra.mxu0 0
  %532 = vmatprep.subr.bf16.mxu0 0
  %533 = vmatpush2.bf16.xpose.msra.mxu0 0
  %534 = vmatprep.subr.bf16.mxu0 0
  %535 = vmatpush2.bf16.xpose.msra.mxu0 0
  %536 = vmatprep.subr.bf16.mxu0 0
  %537 = vmatpush2.bf16.xpose.msra.mxu0 0
  %538 = vmatprep.subr.bf16.mxu0 0
  %539 = vmatpush2.bf16.xpose.msra.mxu0 0
  %540 = vmatprep.subr.bf16.mxu0 0
  %541 = vmatpush2.bf16.xpose.msra.mxu0 0
  %542 = vmatprep.subr.bf16.mxu0 0
  %543 = vmatpush2.bf16.xpose.msra.mxu0 0
  %544 = vmatprep.mubr.bf16.mxu0 0
  %545 = vmatmul.mubr.bf16.gmra.mxu0 %v507
  %v546 = vpop.f32.mrf.mxu0
  %v547 = vadd.f32 %v128, %v546
  %v548 = vpop.f32.mrf.mxu0
  %v549 = vpop.f32.mrf.mxu0
  %v550 = vadd.f32 %v129, %v549
  %v551 = vpop.f32.mrf.mxu0
  %552 = vdwg.mxu0
  %v553 = vsel %vm309, %v547, -inf
  %554 = vmax.xlane.f32.xlu0 %v553
  %v555 = vpop.xlane.xlu0 %554
  %v556 = vsel %vm309, %v550, -inf
  %557 = vmax.xlane.f32.xlu0 %v556
  %v558 = vpop.xlane.xlu0 %557
  %v559 = vsub.f32 %v547, %v555
  %v560 = vsub.f32 %v550, %v558
  %v561 = vmul.f32 %v559, 1.442695
  %v562 = vpow.pop %v561
  %v563 = vmul.f32 %v560, 1.442695
  %v564 = vpow.pop %v563
  %v565 = vsel %vm309, %v562, 0.0
  %566 = vadd.xlane.f32.xlu0 %v565
  %v567 = vpop.xlane.xlu0 %566
  %v568 = vsel %vm309, %v564, 0.0
  %569 = vadd.xlane.f32.xlu0 %v568
  %v570 = vpop.xlane.xlu0 %569
  %v571 = vrcp.pop %v567
  %v572 = vrcp.pop %v570
  %v573 = vmul.f32 %v562, %v571
  %v574 = vmul.f32 %v564, %v572
  %v575 = vpack.c.bf16 %v574, %v573
  %576 = vrot.lane.b32.xlu0 %v257, 48
  %v577 = vpop.permute.xlu0 %576
  %v580 = vsel %vm309, %v575, 0
  %582 = vmatprep.subr.bf16.mxu0 0
  %583 = vmatpush1.bf16.msra.mxu0 0
  %584 = vmatprep.subr.bf16.mxu0 0
  %585 = vmatpush1.bf16.msra.mxu0 0
  %586 = vmatprep.subr.bf16.mxu0 0
  %587 = vmatpush1.bf16.msra.mxu0 0
  %588 = vmatprep.subr.bf16.mxu0 0
  %589 = vmatpush1.bf16.msra.mxu0 0
  %590 = vmatprep.subr.bf16.mxu0 0
  %591 = vmatpush1.bf16.msra.mxu0 0
  %592 = vmatprep.subr.bf16.mxu0 0
  %593 = vmatpush1.bf16.msra.mxu0 0
  %594 = vmatprep.subr.bf16.mxu0 0
  %595 = vmatpush1.bf16.msra.mxu0 0
  %596 = vmatprep.subr.bf16.mxu0 0
  %597 = vmatpush1.bf16.msra.mxu0 %v577
  %598 = vmatprep.subr.bf16.mxu0 0
  %599 = vmatpush2.bf16.msra.mxu0 0
  %600 = vmatprep.subr.bf16.mxu0 0
  %601 = vmatpush2.bf16.msra.mxu0 0
  %602 = vmatprep.subr.bf16.mxu0 0
  %603 = vmatpush2.bf16.msra.mxu0 0
  %604 = vmatprep.subr.bf16.mxu0 0
  %605 = vmatpush2.bf16.msra.mxu0 0
  %606 = vmatprep.subr.bf16.mxu0 0
  %607 = vmatpush2.bf16.msra.mxu0 0
  %608 = vmatprep.subr.bf16.mxu0 0
  %609 = vmatpush2.bf16.msra.mxu0 0
  %610 = vmatprep.subr.bf16.mxu0 0
  %611 = vmatpush2.bf16.msra.mxu0 0
  %612 = vmatprep.subr.bf16.mxu0 0
  %613 = vmatpush2.bf16.msra.mxu0 0
  %614 = vmatprep.mubr.bf16.mxu0 0
  %615 = vmatmul.mubr.bf16.gmra.mxu0 %v580
  %v616 = vpop.f32.mrf.mxu0
  %v617 = vadd.f32 0.0, %v616
  %v618 = vpop.f32.mrf.mxu0
  %v619 = vpop.f32.mrf.mxu0
  %v620 = vadd.f32 0.0, %v619
  %v621 = vpop.f32.mrf.mxu0
  %622 = vdwg.mxu0
  %623 = vrot.lane.b32.xlu0 %v256, 104
  %v624 = vpop.permute.xlu0 %623
  %625 = vrot.lane.b32.xlu0 %v257, 72
  %v626 = vpop.permute.xlu0 %625
  %v628 = vsel %vm261, %v624, 0
  %v631 = vsel %vm261, %v626, 0
  %633 = vmatprep.subr.bf16.mxu0 0
  %634 = vmatpush1.bf16.xpose.msra.mxu0 0
  %635 = vmatprep.subr.bf16.mxu0 0
  %636 = vmatpush1.bf16.xpose.msra.mxu0 0
  %637 = vmatprep.subr.bf16.mxu0 0
  %638 = vmatpush1.bf16.xpose.msra.mxu0 0
  %639 = vmatprep.subr.bf16.mxu0 0
  %640 = vmatpush1.bf16.xpose.msra.mxu0 0
  %641 = vmatprep.subr.bf16.mxu0 0
  %642 = vmatpush1.bf16.xpose.msra.mxu0 0
  %643 = vmatprep.subr.bf16.mxu0 0
  %644 = vmatpush1.bf16.xpose.msra.mxu0 0
  %645 = vmatprep.subr.bf16.mxu0 0
  %646 = vmatpush1.bf16.xpose.msra.mxu0 0
  %647 = vmatprep.subr.bf16.mxu0 0
  %648 = vmatpush1.bf16.xpose.msra.mxu0 %v631
  %649 = vmatprep.subr.bf16.mxu0 0
  %650 = vmatpush2.bf16.xpose.msra.mxu0 0
  %651 = vmatprep.subr.bf16.mxu0 0
  %652 = vmatpush2.bf16.xpose.msra.mxu0 0
  %653 = vmatprep.subr.bf16.mxu0 0
  %654 = vmatpush2.bf16.xpose.msra.mxu0 0
  %655 = vmatprep.subr.bf16.mxu0 0
  %656 = vmatpush2.bf16.xpose.msra.mxu0 0
  %657 = vmatprep.subr.bf16.mxu0 0
  %658 = vmatpush2.bf16.xpose.msra.mxu0 0
  %659 = vmatprep.subr.bf16.mxu0 0
  %660 = vmatpush2.bf16.xpose.msra.mxu0 0
  %661 = vmatprep.subr.bf16.mxu0 0
  %662 = vmatpush2.bf16.xpose.msra.mxu0 0
  %663 = vmatprep.subr.bf16.mxu0 0
  %664 = vmatpush2.bf16.xpose.msra.mxu0 0
  %665 = vmatprep.mubr.bf16.mxu0 0
  %666 = vmatmul.mubr.bf16.gmra.mxu0 %v628
  %v667 = vpop.f32.mrf.mxu0
  %v668 = vadd.f32 %v128, %v667
  %v669 = vpop.f32.mrf.mxu0
  %v670 = vpop.f32.mrf.mxu0
  %v671 = vadd.f32 %v129, %v670
  %v672 = vpop.f32.mrf.mxu0
  %673 = vdwg.mxu0
  %v674 = vsel %vm309, %v668, -inf
  %675 = vmax.xlane.f32.xlu0 %v674
  %v676 = vpop.xlane.xlu0 %675
  %v677 = vsel %vm309, %v671, -inf
  %678 = vmax.xlane.f32.xlu0 %v677
  %v679 = vpop.xlane.xlu0 %678
  %v680 = vsub.f32 %v668, %v676
  %v681 = vsub.f32 %v671, %v679
  %v682 = vmul.f32 %v680, 1.442695
  %v683 = vpow.pop %v682
  %v684 = vmul.f32 %v681, 1.442695
  %v685 = vpow.pop %v684
  %v686 = vsel %vm309, %v683, 0.0
  %687 = vadd.xlane.f32.xlu0 %v686
  %v688 = vpop.xlane.xlu0 %687
  %v689 = vsel %vm309, %v685, 0.0
  %690 = vadd.xlane.f32.xlu0 %v689
  %v691 = vpop.xlane.xlu0 %690
  %v692 = vrcp.pop %v688
  %v693 = vrcp.pop %v691
  %v694 = vmul.f32 %v683, %v692
  %v695 = vmul.f32 %v685, %v693
  %v696 = vpack.c.bf16 %v695, %v694
  %697 = vrot.lane.b32.xlu0 %v257, 40
  %v698 = vpop.permute.xlu0 %697
  %v701 = vsel %vm309, %v696, 0
  %703 = vmatprep.subr.bf16.mxu0 0
  %704 = vmatpush1.bf16.msra.mxu0 0
  %705 = vmatprep.subr.bf16.mxu0 0
  %706 = vmatpush1.bf16.msra.mxu0 0
  %707 = vmatprep.subr.bf16.mxu0 0
  %708 = vmatpush1.bf16.msra.mxu0 0
  %709 = vmatprep.subr.bf16.mxu0 0
  %710 = vmatpush1.bf16.msra.mxu0 0
  %711 = vmatprep.subr.bf16.mxu0 0
  %712 = vmatpush1.bf16.msra.mxu0 0
  %713 = vmatprep.subr.bf16.mxu0 0
  %714 = vmatpush1.bf16.msra.mxu0 0
  %715 = vmatprep.subr.bf16.mxu0 0
  %716 = vmatpush1.bf16.msra.mxu0 0
  %717 = vmatprep.subr.bf16.mxu0 0
  %718 = vmatpush1.bf16.msra.mxu0 %v698
  %719 = vmatprep.subr.bf16.mxu0 0
  %720 = vmatpush2.bf16.msra.mxu0 0
  %721 = vmatprep.subr.bf16.mxu0 0
  %722 = vmatpush2.bf16.msra.mxu0 0
  %723 = vmatprep.subr.bf16.mxu0 0
  %724 = vmatpush2.bf16.msra.mxu0 0
  %725 = vmatprep.subr.bf16.mxu0 0
  %726 = vmatpush2.bf16.msra.mxu0 0
  %727 = vmatprep.subr.bf16.mxu0 0
  %728 = vmatpush2.bf16.msra.mxu0 0
  %729 = vmatprep.subr.bf16.mxu0 0
  %730 = vmatpush2.bf16.msra.mxu0 0
  %731 = vmatprep.subr.bf16.mxu0 0
  %732 = vmatpush2.bf16.msra.mxu0 0
  %733 = vmatprep.subr.bf16.mxu0 0
  %734 = vmatpush2.bf16.msra.mxu0 0
  %735 = vmatprep.mubr.bf16.mxu0 0
  %736 = vmatmul.mubr.bf16.gmra.mxu0 %v701
  %v737 = vpop.f32.mrf.mxu0
  %v738 = vadd.f32 0.0, %v737
  %v739 = vpop.f32.mrf.mxu0
  %v740 = vpop.f32.mrf.mxu0
  %v741 = vadd.f32 0.0, %v740
  %v742 = vpop.f32.mrf.mxu0
  %743 = vdwg.mxu0
  %746 = vrot.lane.b32.xlu0 %v496, 8
  %v747 = vpop.permute.xlu0 %746
  %748 = vrot.lane.b32.xlu0 %v499, 8
  %v749 = vpop.permute.xlu0 %748
  %754 = vrot.lane.b32.xlu0 %v617, 16
  %v755 = vpop.permute.xlu0 %754
  %756 = vrot.lane.b32.xlu0 %v620, 16
  %v757 = vpop.permute.xlu0 %756
  %762 = vrot.lane.b32.xlu0 %v738, 24
  %v763 = vpop.permute.xlu0 %762
  %764 = vrot.lane.b32.xlu0 %v741, 24
  %v765 = vpop.permute.xlu0 %764
  %v768 = vsel %vm261, %v374, %v747
  %v769 = vsel %vm261, %v377, %v749
  %v770 = vsel %vm309, %v768, %v755
  %v771 = vsel %vm309, %v769, %v757
  %vm772 = vcmask 195584
  %v773 = vsel %vm772, %v770, %v763
  %v774 = vsel %vm772, %v771, %v765
  %v775 = vld [vmem:[%s15] sm:$0xff]
  %v776 = vld [vmem:[%s15 + $0x8] sm:$0xff]
  %v777 = vld [vmem:[%s15 + $0x10] sm:$0xff]
  %v778 = vld [vmem:[%s15 + $0x18] sm:$0xff]
  %v779 = vpack.c.bf16 %v774, %v773
  %v780 = vpack.c.bf16 %v776, %v775
  %v781 = vpack.c.bf16 %v778, %v777
  %v782 = vld [vmem:[%s17] sm:$0x1]
  %v784 = vlaneseq
  %v785 = vshrl.u32 %v784, 7
  %v786 = vsub.s32 0, %v785
  %v787 = vrot.slane %v782, %v786
  %v790 = vsel %vm134, %v779, 0
  %792 = vmatprep.subr.bf16.mxu0 0
  %793 = vmatpush1.bf16.msra.mxu0 0
  %794 = vmatprep.subr.bf16.mxu0 0
  %795 = vmatpush1.bf16.msra.mxu0 0
  %796 = vmatprep.subr.bf16.mxu0 0
  %797 = vmatpush1.bf16.msra.mxu0 0
  %798 = vmatprep.subr.bf16.mxu0 0
  %799 = vmatpush1.bf16.msra.mxu0 0
  %800 = vmatprep.subr.bf16.mxu0 0
  %801 = vmatpush1.bf16.msra.mxu0 0
  %802 = vmatprep.subr.bf16.mxu0 0
  %803 = vmatpush1.bf16.msra.mxu0 0
  %804 = vmatprep.subr.bf16.mxu0 0
  %805 = vmatpush1.bf16.msra.mxu0 %v781
  %806 = vmatprep.subr.bf16.mxu0 0
  %807 = vmatpush1.bf16.msra.mxu0 %v780
  %808 = vmatprep.subr.bf16.mxu0 0
  %809 = vmatpush2.bf16.msra.mxu0 0
  %810 = vmatprep.subr.bf16.mxu0 0
  %811 = vmatpush2.bf16.msra.mxu0 0
  %812 = vmatprep.subr.bf16.mxu0 0
  %813 = vmatpush2.bf16.msra.mxu0 0
  %814 = vmatprep.subr.bf16.mxu0 0
  %815 = vmatpush2.bf16.msra.mxu0 0
  %816 = vmatprep.subr.bf16.mxu0 0
  %817 = vmatpush2.bf16.msra.mxu0 0
  %818 = vmatprep.subr.bf16.mxu0 0
  %819 = vmatpush2.bf16.msra.mxu0 0
  %820 = vmatprep.subr.bf16.mxu0 0
  %821 = vmatpush2.bf16.msra.mxu0 0
  %822 = vmatprep.subr.bf16.mxu0 0
  %823 = vmatpush2.bf16.msra.mxu0 0
  %824 = vmatprep.mubr.bf16.mxu0 0
  %825 = vmatmul.mubr.bf16.gmra.mxu0 %v790
  %v826 = vpop.f32.mrf.mxu0
  %v827 = vadd.f32 %v787, %v826
  %v828 = vpop.f32.mrf.mxu0
  %v829 = vpop.f32.mrf.mxu0
  %v830 = vadd.f32 %v787, %v829
  %v831 = vpop.f32.mrf.mxu0
  %832 = vdwg.mxu0
  %v833 = vadd.f32 %v827, %v192
  %v834 = vadd.f32 %v830, %v193
  %v835 = vld [vmem:[%s19] sm:$0x1]
  %v836 = vld [vmem:[%s21] sm:$0x1]
  %v837 = vsel %vm134, %v833, 0.0
  %838 = vadd.xlane.f32.xlu0 %v837
  %v839 = vpop.xlane.xlu0 %838
  %v840 = vsel %vm134, %v834, 0.0
  %841 = vadd.xlane.f32.xlu0 %v840
  %v842 = vpop.xlane.xlu0 %841
  %v843 = vmul.f32 %v839, %v141
  %v844 = vmul.f32 %v842, %v141
  %v845 = vsub.f32 %v833, %v843
  %v846 = vsub.f32 %v834, %v844
  %v847 = vmul.f32 %v845, %v845
  %v848 = vmul.f32 %v846, %v846
  %v849 = vsel %vm134, %v847, 0.0
  %850 = vadd.xlane.f32.xlu0 %v849
  %v851 = vpop.xlane.xlu0 %850
  %v852 = vsel %vm134, %v848, 0.0
  %853 = vadd.xlane.f32.xlu0 %v852
  %v854 = vpop.xlane.xlu0 %853
  %v855 = vmul.f32 %v851, %v141
  %v856 = vmul.f32 %v854, %v141
  %v857 = vadd.f32 %v855, 1e-05
  %v858 = vadd.f32 %v856, 1e-05
  %v859 = vrsqrt.pop %v857
  %v860 = vrsqrt.pop %v858
  %v861 = vmul.f32 %v845, %v859
  %v862 = vmul.f32 %v846, %v860
  %v864 = vlaneseq
  %v865 = vshrl.u32 %v864, 7
  %v866 = vsub.s32 0, %v865
  %v867 = vrot.slane %v835, %v866
  %v869 = vmul.f32 %v861, %v867
  %v870 = vmul.f32 %v862, %v867
  %v872 = vlaneseq
  %v873 = vshrl.u32 %v872, 7
  %v874 = vsub.s32 0, %v873
  %v875 = vrot.slane %v836, %v874
  %v877 = vadd.f32 %v869, %v875
  %v878 = vadd.f32 %v870, %v875
  %v879 = vld [vmem:[%s23] sm:$0xff]
  %v880 = vld [vmem:[%s23 + $0x8] sm:$0xff]
  %v881 = vld [vmem:[%s23 + $0x10] sm:$0xff]
  %v882 = vld [vmem:[%s23 + $0x18] sm:$0xff]
  %v883 = vpack.c.bf16 %v878, %v877
  %v884 = vpack.c.bf16 %v880, %v879
  %v885 = vpack.c.bf16 %v882, %v881
  %v886 = vld [vmem:[%s25] sm:$0x1]
  %v888 = vlaneseq
  %v889 = vshrl.u32 %v888, 7
  %v890 = vsub.s32 0, %v889
  %v891 = vrot.slane %v886, %v890
  %v894 = vsel %vm134, %v883, 0
  %896 = vmatprep.subr.bf16.mxu0 0
  %897 = vmatpush1.bf16.msra.mxu0 0
  %898 = vmatprep.subr.bf16.mxu0 0
  %899 = vmatpush1.bf16.msra.mxu0 0
  %900 = vmatprep.subr.bf16.mxu0 0
  %901 = vmatpush1.bf16.msra.mxu0 0
  %902 = vmatprep.subr.bf16.mxu0 0
  %903 = vmatpush1.bf16.msra.mxu0 0
  %904 = vmatprep.subr.bf16.mxu0 0
  %905 = vmatpush1.bf16.msra.mxu0 0
  %906 = vmatprep.subr.bf16.mxu0 0
  %907 = vmatpush1.bf16.msra.mxu0 0
  %908 = vmatprep.subr.bf16.mxu0 0
  %909 = vmatpush1.bf16.msra.mxu0 %v885
  %910 = vmatprep.subr.bf16.mxu0 0
  %911 = vmatpush1.bf16.msra.mxu0 %v884
  %912 = vmatprep.subr.bf16.mxu0 0
  %913 = vmatpush2.bf16.msra.mxu0 0
  %914 = vmatprep.subr.bf16.mxu0 0
  %915 = vmatpush2.bf16.msra.mxu0 0
  %916 = vmatprep.subr.bf16.mxu0 0
  %917 = vmatpush2.bf16.msra.mxu0 0
  %918 = vmatprep.subr.bf16.mxu0 0
  %919 = vmatpush2.bf16.msra.mxu0 0
  %920 = vmatprep.subr.bf16.mxu0 0
  %921 = vmatpush2.bf16.msra.mxu0 0
  %922 = vmatprep.subr.bf16.mxu0 0
  %923 = vmatpush2.bf16.msra.mxu0 0
  %924 = vmatprep.subr.bf16.mxu0 0
  %925 = vmatpush2.bf16.msra.mxu0 0
  %926 = vmatprep.subr.bf16.mxu0 0
  %927 = vmatpush2.bf16.msra.mxu0 0
  %928 = vmatprep.mubr.bf16.mxu0 0
  %929 = vmatmul.mubr.bf16.gmra.mxu0 %v894
  %v930 = vpop.f32.mrf.mxu0
  %v931 = vadd.f32 %v891, %v930
  %v932 = vpop.f32.mrf.mxu0
  %v933 = vpop.f32.mrf.mxu0
  %v934 = vadd.f32 %v891, %v933
  %v935 = vpop.f32.mrf.mxu0
  %936 = vdwg.mxu0
  %v937 = vmul.f32 %v931, 0.5
  %v938 = vmul.f32 %v934, 0.5
  %v939 = vmul.f32 %v931, 0.044715
  %v940 = vmul.f32 %v934, 0.044715
  %v941 = vmul.f32 %v939, %v931
  %v942 = vmul.f32 %v940, %v934
  %v943 = vmul.f32 %v941, %v931
  %v944 = vmul.f32 %v942, %v934
  %v945 = vadd.f32 %v931, %v943
  %v946 = vadd.f32 %v934, %v944
  %v947 = vmul.f32 %v945, 0.7978846
  %v948 = vmul.f32 %v946, 0.7978846
  %v949 = vtanh.pop %v947
  %v950 = vtanh.pop %v948
  %v951 = vadd.f32 %v949, 1.0
  %v952 = vadd.f32 %v950, 1.0
  %v953 = vmul.f32 %v937, %v951
  %v954 = vmul.f32 %v938, %v952
  %v955 = vld [vmem:[%s27] sm:$0xff]
  %v956 = vld [vmem:[%s27 + $0x8] sm:$0xff]
  %v957 = vld [vmem:[%s27 + $0x10] sm:$0xff]
  %v958 = vld [vmem:[%s27 + $0x18] sm:$0xff]
  %v959 = vld [vmem:[%s27 + $0x20] sm:$0xff]
  %v960 = vld [vmem:[%s27 + $0x28] sm:$0xff]
  %v961 = vld [vmem:[%s27 + $0x30] sm:$0xff]
  %v962 = vld [vmem:[%s27 + $0x38] sm:$0xff]
  %v963 = vld [vmem:[%s27 + $0x40] sm:$0xff]
  %v964 = vld [vmem:[%s27 + $0x48] sm:$0xff]
  %v965 = vld [vmem:[%s27 + $0x50] sm:$0xff]
  %v966 = vld [vmem:[%s27 + $0x58] sm:$0xff]
  %v967 = vld [vmem:[%s27 + $0x60] sm:$0xff]
  %v968 = vld [vmem:[%s27 + $0x68] sm:$0xff]
  %v969 = vld [vmem:[%s27 + $0x70] sm:$0xff]
  %v970 = vld [vmem:[%s27 + $0x78] sm:$0xff]
  %v971 = vpack.c.bf16 %v954, %v953
  %v972 = vpack.c.bf16 %v956, %v955
  %v973 = vpack.c.bf16 %v958, %v957
  %v974 = vpack.c.bf16 %v960, %v959
  %v975 = vpack.c.bf16 %v962, %v961
  %v976 = vpack.c.bf16 %v964, %v963
  %v977 = vpack.c.bf16 %v966, %v965
  %v978 = vpack.c.bf16 %v968, %v967
  %v979 = vpack.c.bf16 %v970, %v969
  %v980 = vld [vmem:[%s29] sm:$0x1]
  %v982 = vlaneseq
  %v983 = vshrl.u32 %v982, 7
  %v984 = vsub.s32 0, %v983
  %v985 = vrot.slane %v980, %v984
  %987 = vmatprep.subr.bf16.mxu0 0
  %988 = vmatpush1.bf16.msra.mxu0 %v979
  %989 = vmatprep.subr.bf16.mxu0 0
  %990 = vmatpush1.bf16.msra.mxu0 %v978
  %991 = vmatprep.subr.bf16.mxu0 0
  %992 = vmatpush1.bf16.msra.mxu0 %v977
  %993 = vmatprep.subr.bf16.mxu0 0
  %994 = vmatpush1.bf16.msra.mxu0 %v976
  %995 = vmatprep.subr.bf16.mxu0 0
  %996 = vmatpush1.bf16.msra.mxu0 %v975
  %997 = vmatprep.subr.bf16.mxu0 0
  %998 = vmatpush1.bf16.msra.mxu0 %v974
  %999 = vmatprep.subr.bf16.mxu0 0
  %1000 = vmatpush1.bf16.msra.mxu0 %v973
  %1001 = vmatprep.subr.bf16.mxu0 0
  %1002 = vmatpush1.bf16.msra.mxu0 %v972
  %1003 = vmatprep.subr.bf16.mxu0 0
  %1004 = vmatpush2.bf16.msra.mxu0 0
  %1005 = vmatprep.subr.bf16.mxu0 0
  %1006 = vmatpush2.bf16.msra.mxu0 0
  %1007 = vmatprep.subr.bf16.mxu0 0
  %1008 = vmatpush2.bf16.msra.mxu0 0
  %1009 = vmatprep.subr.bf16.mxu0 0
  %1010 = vmatpush2.bf16.msra.mxu0 0
  %1011 = vmatprep.subr.bf16.mxu0 0
  %1012 = vmatpush2.bf16.msra.mxu0 0
  %1013 = vmatprep.subr.bf16.mxu0 0
  %1014 = vmatpush2.bf16.msra.mxu0 0
  %1015 = vmatprep.subr.bf16.mxu0 0
  %1016 = vmatpush2.bf16.msra.mxu0 0
  %1017 = vmatprep.subr.bf16.mxu0 0
  %1018 = vmatpush2.bf16.msra.mxu0 0
  %1019 = vmatprep.mubr.bf16.mxu0 0
  %1020 = vmatmul.mubr.bf16.gmra.mxu0 %v971
  %v1021 = vpop.f32.mrf.mxu0
  %v1022 = vadd.f32 %v985, %v1021
  %v1023 = vpop.f32.mrf.mxu0
  %v1024 = vpop.f32.mrf.mxu0
  %v1025 = vadd.f32 %v985, %v1024
  %v1026 = vpop.f32.mrf.mxu0
  %1027 = vdwg.mxu0
  %v1028 = vadd.f32 %v1022, %v877
  %v1029 = vadd.f32 %v1025, %v878
  %v1030 = vld [vmem:[%s31] sm:$0x1]
  %v1031 = vld [vmem:[%s33] sm:$0x1]
  %v1032 = vsel %vm134, %v1028, 0.0
  %1033 = vadd.xlane.f32.xlu0 %v1032
  %v1034 = vpop.xlane.xlu0 %1033
  %v1035 = vsel %vm134, %v1029, 0.0
  %1036 = vadd.xlane.f32.xlu0 %v1035
  %v1037 = vpop.xlane.xlu0 %1036
  %v1038 = vmul.f32 %v1034, %v141
  %v1039 = vmul.f32 %v1037, %v141
  %v1040 = vsub.f32 %v1028, %v1038
  %v1041 = vsub.f32 %v1029, %v1039
  %v1042 = vmul.f32 %v1040, %v1040
  %v1043 = vmul.f32 %v1041, %v1041
  %v1044 = vsel %vm134, %v1042, 0.0
  %1045 = vadd.xlane.f32.xlu0 %v1044
  %v1046 = vpop.xlane.xlu0 %1045
  %v1047 = vsel %vm134, %v1043, 0.0
  %1048 = vadd.xlane.f32.xlu0 %v1047
  %v1049 = vpop.xlane.xlu0 %1048
  %v1050 = vmul.f32 %v1046, %v141
  %v1051 = vmul.f32 %v1049, %v141
  %v1052 = vadd.f32 %v1050, 1e-05
  %v1053 = vadd.f32 %v1051, 1e-05
  %v1054 = vrsqrt.pop %v1052
  %v1055 = vrsqrt.pop %v1053
  %v1056 = vmul.f32 %v1040, %v1054
  %v1057 = vmul.f32 %v1041, %v1055
  %v1059 = vlaneseq
  %v1060 = vshrl.u32 %v1059, 7
  %v1061 = vsub.s32 0, %v1060
  %v1062 = vrot.slane %v1030, %v1061
  %v1064 = vmul.f32 %v1056, %v1062
  %v1065 = vmul.f32 %v1057, %v1062
  %v1067 = vlaneseq
  %v1068 = vshrl.u32 %v1067, 7
  %v1069 = vsub.s32 0, %v1068
  %v1070 = vrot.slane %v1031, %v1069
  %v1072 = vadd.f32 %v1064, %v1070
  %v1073 = vadd.f32 %v1065, %v1070
  %1074 = vst.msk [vmem:[%s61] sm:$0xff] %vm134, %v1072
  %1075 = vst.msk [vmem:[%s61 + $0x8] sm:$0xff] %vm134, %v1073
  %v1076 = vld [vmem:[%s35] sm:$0xff]
  %v1077 = vld [vmem:[%s35 + $0x8] sm:$0xff]
  %v1078 = vld [vmem:[%s35 + $0x10] sm:$0xff]
  %v1079 = vld [vmem:[%s35 + $0x18] sm:$0xff]
  %v1080 = vpack.c.bf16 %v1073, %v1072
  %v1081 = vpack.c.bf16 %v1077, %v1076
  %v1082 = vpack.c.bf16 %v1079, %v1078
  %v1083 = vld [vmem:[%s37] sm:$0x1]
  %v1085 = vlaneseq
  %v1086 = vshrl.u32 %v1085, 7
  %v1087 = vsub.s32 0, %v1086
  %v1088 = vrot.slane %v1083, %v1087
  %v1091 = vsel %vm134, %v1080, 0
  %1093 = vmatprep.subr.bf16.mxu0 0
  %1094 = vmatpush1.bf16.msra.mxu0 0
  %1095 = vmatprep.subr.bf16.mxu0 0
  %1096 = vmatpush1.bf16.msra.mxu0 0
  %1097 = vmatprep.subr.bf16.mxu0 0
  %1098 = vmatpush1.bf16.msra.mxu0 0
  %1099 = vmatprep.subr.bf16.mxu0 0
  %1100 = vmatpush1.bf16.msra.mxu0 0
  %1101 = vmatprep.subr.bf16.mxu0 0
  %1102 = vmatpush1.bf16.msra.mxu0 0
  %1103 = vmatprep.subr.bf16.mxu0 0
  %1104 = vmatpush1.bf16.msra.mxu0 0
  %1105 = vmatprep.subr.bf16.mxu0 0
  %1106 = vmatpush1.bf16.msra.mxu0 %v1082
  %1107 = vmatprep.subr.bf16.mxu0 0
  %1108 = vmatpush1.bf16.msra.mxu0 %v1081
  %1109 = vmatprep.subr.bf16.mxu0 0
  %1110 = vmatpush2.bf16.msra.mxu0 0
  %1111 = vmatprep.subr.bf16.mxu0 0
  %1112 = vmatpush2.bf16.msra.mxu0 0
  %1113 = vmatprep.subr.bf16.mxu0 0
  %1114 = vmatpush2.bf16.msra.mxu0 0
  %1115 = vmatprep.subr.bf16.mxu0 0
  %1116 = vmatpush2.bf16.msra.mxu0 0
  %1117 = vmatprep.subr.bf16.mxu0 0
  %1118 = vmatpush2.bf16.msra.mxu0 0
  %1119 = vmatprep.subr.bf16.mxu0 0
  %1120 = vmatpush2.bf16.msra.mxu0 0
  %1121 = vmatprep.subr.bf16.mxu0 0
  %1122 = vmatpush2.bf16.msra.mxu0 0
  %1123 = vmatprep.subr.bf16.mxu0 0
  %1124 = vmatpush2.bf16.msra.mxu0 0
  %1125 = vmatprep.mubr.bf16.mxu0 0
  %1126 = vmatmul.mubr.bf16.gmra.mxu0 %v1091
  %v1127 = vpop.f32.mrf.mxu0
  %v1128 = vadd.f32 %v1088, %v1127
  %v1129 = vpop.f32.mrf.mxu0
  %v1130 = vpop.f32.mrf.mxu0
  %v1131 = vadd.f32 %v1088, %v1130
  %v1132 = vpop.f32.mrf.mxu0
  %1133 = vdwg.mxu0
  %v1134 = vmul.f32 %v1128, 0.35355338
  %v1135 = vmul.f32 %v1131, 0.35355338
  %v1136 = vpack.c.bf16 %v1135, %v1134
  %v1137 = vpack.c.bf16 %v1131, %v1128
  %1139 = vrot.lane.b32.xlu0 %v1137, 96
  %v1140 = vpop.permute.xlu0 %1139
  %v1142 = vsel %vm261, %v1136, 0
  %v1145 = vsel %vm261, %v1140, 0
  %1147 = vmatprep.subr.bf16.mxu0 0
  %1148 = vmatpush1.bf16.xpose.msra.mxu0 0
  %1149 = vmatprep.subr.bf16.mxu0 0
  %1150 = vmatpush1.bf16.xpose.msra.mxu0 0
  %1151 = vmatprep.subr.bf16.mxu0 0
  %1152 = vmatpush1.bf16.xpose.msra.mxu0 0
  %1153 = vmatprep.subr.bf16.mxu0 0
  %1154 = vmatpush1.bf16.xpose.msra.mxu0 0
  %1155 = vmatprep.subr.bf16.mxu0 0
  %1156 = vmatpush1.bf16.xpose.msra.mxu0 0
  %1157 = vmatprep.subr.bf16.mxu0 0
  %1158 = vmatpush1.bf16.xpose.msra.mxu0 0
  %1159 = vmatprep.subr.bf16.mxu0 0
  %1160 = vmatpush1.bf16.xpose.msra.mxu0 0
  %1161 = vmatprep.subr.bf16.mxu0 0
  %1162 = vmatpush1.bf16.xpose.msra.mxu0 %v1145
  %1163 = vmatprep.subr.bf16.mxu0 0
  %1164 = vmatpush2.bf16.xpose.msra.mxu0 0
  %1165 = vmatprep.subr.bf16.mxu0 0
  %1166 = vmatpush2.bf16.xpose.msra.mxu0 0
  %1167 = vmatprep.subr.bf16.mxu0 0
  %1168 = vmatpush2.bf16.xpose.msra.mxu0 0
  %1169 = vmatprep.subr.bf16.mxu0 0
  %1170 = vmatpush2.bf16.xpose.msra.mxu0 0
  %1171 = vmatprep.subr.bf16.mxu0 0
  %1172 = vmatpush2.bf16.xpose.msra.mxu0 0
  %1173 = vmatprep.subr.bf16.mxu0 0
  %1174 = vmatpush2.bf16.xpose.msra.mxu0 0
  %1175 = vmatprep.subr.bf16.mxu0 0
  %1176 = vmatpush2.bf16.xpose.msra.mxu0 0
  %1177 = vmatprep.subr.bf16.mxu0 0
  %1178 = vmatpush2.bf16.xpose.msra.mxu0 0
  %1179 = vmatprep.mubr.bf16.mxu0 0
  %1180 = vmatmul.mubr.bf16.gmra.mxu0 %v1142
  %v1181 = vpop.f32.mrf.mxu0
  %v1182 = vadd.f32 %v128, %v1181
  %v1183 = vpop.f32.mrf.mxu0
  %v1184 = vpop.f32.mrf.mxu0
  %v1185 = vadd.f32 %v129, %v1184
  %v1186 = vpop.f32.mrf.mxu0
  %1187 = vdwg.mxu0
  %v1188 = vsel %vm309, %v1182, -inf
  %1189 = vmax.xlane.f32.xlu0 %v1188
  %v1190 = vpop.xlane.xlu0 %1189
  %v1191 = vsel %vm309, %v1185, -inf
  %1192 = vmax.xlane.f32.xlu0 %v1191
  %v1193 = vpop.xlane.xlu0 %1192
  %v1194 = vsub.f32 %v1182, %v1190
  %v1195 = vsub.f32 %v1185, %v1193
  %v1196 = vmul.f32 %v1194, 1.442695
  %v1197 = vpow.pop %v1196
  %v1198 = vmul.f32 %v1195, 1.442695
  %v1199 = vpow.pop %v1198
  %v1200 = vsel %vm309, %v1197, 0.0
  %1201 = vadd.xlane.f32.xlu0 %v1200
  %v1202 = vpop.xlane.xlu0 %1201
  %v1203 = vsel %vm309, %v1199, 0.0
  %1204 = vadd.xlane.f32.xlu0 %v1203
  %v1205 = vpop.xlane.xlu0 %1204
  %v1206 = vrcp.pop %v1202
  %v1207 = vrcp.pop %v1205
  %v1208 = vmul.f32 %v1197, %v1206
  %v1209 = vmul.f32 %v1199, %v1207
  %v1210 = vpack.c.bf16 %v1209, %v1208
  %1211 = vrot.lane.b32.xlu0 %v1137, 64
  %v1212 = vpop.permute.xlu0 %1211
  %v1215 = vsel %vm309, %v1210, 0
  %1217 = vmatprep.subr.bf16.mxu0 0
  %1218 = vmatpush1.bf16.msra.mxu0 0
  %1219 = vmatprep.subr.bf16.mxu0 0
  %1220 = vmatpush1.bf16.msra.mxu0 0
  %1221 = vmatprep.subr.bf16.mxu0 0
  %1222 = vmatpush1.bf16.msra.mxu0 0
  %1223 = vmatprep.subr.bf16.mxu0 0
  %1224 = vmatpush1.bf16.msra.mxu0 0
  %1225 = vmatprep.subr.bf16.mxu0 0
  %1226 = vmatpush1.bf16.msra.mxu0 0
  %1227 = vmatprep.subr.bf16.mxu0 0
  %1228 = vmatpush1.bf16.msra.mxu0 0
  %1229 = vmatprep.subr.bf16.mxu0 0
  %1230 = vmatpush1.bf16.msra.mxu0 0
  %1231 = vmatprep.subr.bf16.mxu0 0
  %1232 = vmatpush1.bf16.msra.mxu0 %v1212
  %1233 = vmatprep.subr.bf16.mxu0 0
  %1234 = vmatpush2.bf16.msra.mxu0 0
  %1235 = vmatprep.subr.bf16.mxu0 0
  %1236 = vmatpush2.bf16.msra.mxu0 0
  %1237 = vmatprep.subr.bf16.mxu0 0
  %1238 = vmatpush2.bf16.msra.mxu0 0
  %1239 = vmatprep.subr.bf16.mxu0 0
  %1240 = vmatpush2.bf16.msra.mxu0 0
  %1241 = vmatprep.subr.bf16.mxu0 0
  %1242 = vmatpush2.bf16.msra.mxu0 0
  %1243 = vmatprep.subr.bf16.mxu0 0
  %1244 = vmatpush2.bf16.msra.mxu0 0
  %1245 = vmatprep.subr.bf16.mxu0 0
  %1246 = vmatpush2.bf16.msra.mxu0 0
  %1247 = vmatprep.subr.bf16.mxu0 0
  %1248 = vmatpush2.bf16.msra.mxu0 0
  %1249 = vmatprep.mubr.bf16.mxu0 0
  %1250 = vmatmul.mubr.bf16.gmra.mxu0 %v1215
  %v1251 = vpop.f32.mrf.mxu0
  %v1252 = vadd.f32 0.0, %v1251
  %v1253 = vpop.f32.mrf.mxu0
  %v1254 = vpop.f32.mrf.mxu0
  %v1255 = vadd.f32 0.0, %v1254
  %v1256 = vpop.f32.mrf.mxu0
  %1257 = vdwg.mxu0
  %1259 = vrot.lane.b32.xlu0 %v1136, 120
  %v1260 = vpop.permute.xlu0 %1259
  %1261 = vrot.lane.b32.xlu0 %v1137, 88
  %v1262 = vpop.permute.xlu0 %1261
  %v1264 = vsel %vm261, %v1260, 0
  %v1267 = vsel %vm261, %v1262, 0
  %1269 = vmatprep.subr.bf16.mxu0 0
  %1270 = vmatpush1.bf16.xpose.msra.mxu0 0
  %1271 = vmatprep.subr.bf16.mxu0 0
  %1272 = vmatpush1.bf16.xpose.msra.mxu0 0
  %1273 = vmatprep.subr.bf16.mxu0 0
  %1274 = vmatpush1.bf16.xpose.msra.mxu0 0
  %1275 = vmatprep.subr.bf16.mxu0 0
  %1276 = vmatpush1.bf16.xpose.msra.mxu0 0
  %1277 = vmatprep.subr.bf16.mxu0 0
  %1278 = vmatpush1.bf16.xpose.msra.mxu0 0
  %1279 = vmatprep.subr.bf16.mxu0 0
  %1280 = vmatpush1.bf16.xpose.msra.mxu0 0
  %1281 = vmatprep.subr.bf16.mxu0 0
  %1282 = vmatpush1.bf16.xpose.msra.mxu0 0
  %1283 = vmatprep.subr.bf16.mxu0 0
  %1284 = vmatpush1.bf16.xpose.msra.mxu0 %v1267
  %1285 = vmatprep.subr.bf16.mxu0 0
  %1286 = vmatpush2.bf16.xpose.msra.mxu0 0
  %1287 = vmatprep.subr.bf16.mxu0 0
  %1288 = vmatpush2.bf16.xpose.msra.mxu0 0
  %1289 = vmatprep.subr.bf16.mxu0 0
  %1290 = vmatpush2.bf16.xpose.msra.mxu0 0
  %1291 = vmatprep.subr.bf16.mxu0 0
  %1292 = vmatpush2.bf16.xpose.msra.mxu0 0
  %1293 = vmatprep.subr.bf16.mxu0 0
  %1294 = vmatpush2.bf16.xpose.msra.mxu0 0
  %1295 = vmatprep.subr.bf16.mxu0 0
  %1296 = vmatpush2.bf16.xpose.msra.mxu0 0
  %1297 = vmatprep.subr.bf16.mxu0 0
  %1298 = vmatpush2.bf16.xpose.msra.mxu0 0
  %1299 = vmatprep.subr.bf16.mxu0 0
  %1300 = vmatpush2.bf16.xpose.msra.mxu0 0
  %1301 = vmatprep.mubr.bf16.mxu0 0
  %1302 = vmatmul.mubr.bf16.gmra.mxu0 %v1264
  %v1303 = vpop.f32.mrf.mxu0
  %v1304 = vadd.f32 %v128, %v1303
  %v1305 = vpop.f32.mrf.mxu0
  %v1306 = vpop.f32.mrf.mxu0
  %v1307 = vadd.f32 %v129, %v1306
  %v1308 = vpop.f32.mrf.mxu0
  %1309 = vdwg.mxu0
  %v1310 = vsel %vm309, %v1304, -inf
  %1311 = vmax.xlane.f32.xlu0 %v1310
  %v1312 = vpop.xlane.xlu0 %1311
  %v1313 = vsel %vm309, %v1307, -inf
  %1314 = vmax.xlane.f32.xlu0 %v1313
  %v1315 = vpop.xlane.xlu0 %1314
  %v1316 = vsub.f32 %v1304, %v1312
  %v1317 = vsub.f32 %v1307, %v1315
  %v1318 = vmul.f32 %v1316, 1.442695
  %v1319 = vpow.pop %v1318
  %v1320 = vmul.f32 %v1317, 1.442695
  %v1321 = vpow.pop %v1320
  %v1322 = vsel %vm309, %v1319, 0.0
  %1323 = vadd.xlane.f32.xlu0 %v1322
  %v1324 = vpop.xlane.xlu0 %1323
  %v1325 = vsel %vm309, %v1321, 0.0
  %1326 = vadd.xlane.f32.xlu0 %v1325
  %v1327 = vpop.xlane.xlu0 %1326
  %v1328 = vrcp.pop %v1324
  %v1329 = vrcp.pop %v1327
  %v1330 = vmul.f32 %v1319, %v1328
  %v1331 = vmul.f32 %v1321, %v1329
  %v1332 = vpack.c.bf16 %v1331, %v1330
  %1333 = vrot.lane.b32.xlu0 %v1137, 56
  %v1334 = vpop.permute.xlu0 %1333
  %v1337 = vsel %vm309, %v1332, 0
  %1339 = vmatprep.subr.bf16.mxu0 0
  %1340 = vmatpush1.bf16.msra.mxu0 0
  %1341 = vmatprep.subr.bf16.mxu0 0
  %1342 = vmatpush1.bf16.msra.mxu0 0
  %1343 = vmatprep.subr.bf16.mxu0 0
  %1344 = vmatpush1.bf16.msra.mxu0 0
  %1345 = vmatprep.subr.bf16.mxu0 0
  %1346 = vmatpush1.bf16.msra.mxu0 0
  %1347 = vmatprep.subr.bf16.mxu0 0
  %1348 = vmatpush1.bf16.msra.mxu0 0
  %1349 = vmatprep.subr.bf16.mxu0 0
  %1350 = vmatpush1.bf16.msra.mxu0 0
  %1351 = vmatprep.subr.bf16.mxu0 0
  %1352 = vmatpush1.bf16.msra.mxu0 0
  %1353 = vmatprep.subr.bf16.mxu0 0
  %1354 = vmatpush1.bf16.msra.mxu0 %v1334
  %1355 = vmatprep.subr.bf16.mxu0 0
  %1356 = vmatpush2.bf16.msra.mxu0 0
  %1357 = vmatprep.subr.bf16.mxu0 0
  %1358 = vmatpush2.bf16.msra.mxu0 0
  %1359 = vmatprep.subr.bf16.mxu0 0
  %1360 = vmatpush2.bf16.msra.mxu0 0
  %1361 = vmatprep.subr.bf16.mxu0 0
  %1362 = vmatpush2.bf16.msra.mxu0 0
  %1363 = vmatprep.subr.bf16.mxu0 0
  %1364 = vmatpush2.bf16.msra.mxu0 0
  %1365 = vmatprep.subr.bf16.mxu0 0
  %1366 = vmatpush2.bf16.msra.mxu0 0
  %1367 = vmatprep.subr.bf16.mxu0 0
  %1368 = vmatpush2.bf16.msra.mxu0 0
  %1369 = vmatprep.subr.bf16.mxu0 0
  %1370 = vmatpush2.bf16.msra.mxu0 0
  %1371 = vmatprep.mubr.bf16.mxu0 0
  %1372 = vmatmul.mubr.bf16.gmra.mxu0 %v1337
  %v1373 = vpop.f32.mrf.mxu0
  %v1374 = vadd.f32 0.0, %v1373
  %v1375 = vpop.f32.mrf.mxu0
  %v1376 = vpop.f32.mrf.mxu0
  %v1377 = vadd.f32 0.0, %v1376
  %v1378 = vpop.f32.mrf.mxu0
  %1379 = vdwg.mxu0
  %1380 = vrot.lane.b32.xlu0 %v1136, 112
  %v1381 = vpop.permute.xlu0 %1380
  %1382 = vrot.lane.b32.xlu0 %v1137, 80
  %v1383 = vpop.permute.xlu0 %1382
  %v1385 = vsel %vm261, %v1381, 0
  %v1388 = vsel %vm261, %v1383, 0
  %1390 = vmatprep.subr.bf16.mxu0 0
  %1391 = vmatpush1.bf16.xpose.msra.mxu0 0
  %1392 = vmatprep.subr.bf16.mxu0 0
  %1393 = vmatpush1.bf16.xpose.msra.mxu0 0
  %1394 = vmatprep.subr.bf16.mxu0 0
  %1395 = vmatpush1.bf16.xpose.msra.mxu0 0
  %1396 = vmatprep.subr.bf16.mxu0 0
  %1397 = vmatpush1.bf16.xpose.msra.mxu0 0
  %1398 = vmatprep.subr.bf16.mxu0 0
  %1399 = vmatpush1.bf16.xpose.msra.mxu0 0
  %1400 = vmatprep.subr.bf16.mxu0 0
  %1401 = vmatpush1.bf16.xpose.msra.mxu0 0
  %1402 = vmatprep.subr.bf16.mxu0 0
  %1403 = vmatpush1.bf16.xpose.msra.mxu0 0
  %1404 = vmatprep.subr.bf16.mxu0 0
  %1405 = vmatpush1.bf16.xpose.msra.mxu0 %v1388
  %1406 = vmatprep.subr.bf16.mxu0 0
  %1407 = vmatpush2.bf16.xpose.msra.mxu0 0
  %1408 = vmatprep.subr.bf16.mxu0 0
  %1409 = vmatpush2.bf16.xpose.msra.mxu0 0
  %1410 = vmatprep.subr.bf16.mxu0 0
  %1411 = vmatpush2.bf16.xpose.msra.mxu0 0
  %1412 = vmatprep.subr.bf16.mxu0 0
  %1413 = vmatpush2.bf16.xpose.msra.mxu0 0
  %1414 = vmatprep.subr.bf16.mxu0 0
  %1415 = vmatpush2.bf16.xpose.msra.mxu0 0
  %1416 = vmatprep.subr.bf16.mxu0 0
  %1417 = vmatpush2.bf16.xpose.msra.mxu0 0
  %1418 = vmatprep.subr.bf16.mxu0 0
  %1419 = vmatpush2.bf16.xpose.msra.mxu0 0
  %1420 = vmatprep.subr.bf16.mxu0 0
  %1421 = vmatpush2.bf16.xpose.msra.mxu0 0
  %1422 = vmatprep.mubr.bf16.mxu0 0
  %1423 = vmatmul.mubr.bf16.gmra.mxu0 %v1385
  %v1424 = vpop.f32.mrf.mxu0
  %v1425 = vadd.f32 %v128, %v1424
  %v1426 = vpop.f32.mrf.mxu0
  %v1427 = vpop.f32.mrf.mxu0
  %v1428 = vadd.f32 %v129, %v1427
  %v1429 = vpop.f32.mrf.mxu0
  %1430 = vdwg.mxu0
  %v1431 = vsel %vm309, %v1425, -inf
  %1432 = vmax.xlane.f32.xlu0 %v1431
  %v1433 = vpop.xlane.xlu0 %1432
  %v1434 = vsel %vm309, %v1428, -inf
  %1435 = vmax.xlane.f32.xlu0 %v1434
  %v1436 = vpop.xlane.xlu0 %1435
  %v1437 = vsub.f32 %v1425, %v1433
  %v1438 = vsub.f32 %v1428, %v1436
  %v1439 = vmul.f32 %v1437, 1.442695
  %v1440 = vpow.pop %v1439
  %v1441 = vmul.f32 %v1438, 1.442695
  %v1442 = vpow.pop %v1441
  %v1443 = vsel %vm309, %v1440, 0.0
  %1444 = vadd.xlane.f32.xlu0 %v1443
  %v1445 = vpop.xlane.xlu0 %1444
  %v1446 = vsel %vm309, %v1442, 0.0
  %1447 = vadd.xlane.f32.xlu0 %v1446
  %v1448 = vpop.xlane.xlu0 %1447
  %v1449 = vrcp.pop %v1445
  %v1450 = vrcp.pop %v1448
  %v1451 = vmul.f32 %v1440, %v1449
  %v1452 = vmul.f32 %v1442, %v1450
  %v1453 = vpack.c.bf16 %v1452, %v1451
  %1454 = vrot.lane.b32.xlu0 %v1137, 48
  %v1455 = vpop.permute.xlu0 %1454
  %v1458 = vsel %vm309, %v1453, 0
  %1460 = vmatprep.subr.bf16.mxu0 0
  %1461 = vmatpush1.bf16.msra.mxu0 0
  %1462 = vmatprep.subr.bf16.mxu0 0
  %1463 = vmatpush1.bf16.msra.mxu0 0
  %1464 = vmatprep.subr.bf16.mxu0 0
  %1465 = vmatpush1.bf16.msra.mxu0 0
  %1466 = vmatprep.subr.bf16.mxu0 0
  %1467 = vmatpush1.bf16.msra.mxu0 0
  %1468 = vmatprep.subr.bf16.mxu0 0
  %1469 = vmatpush1.bf16.msra.mxu0 0
  %1470 = vmatprep.subr.bf16.mxu0 0
  %1471 = vmatpush1.bf16.msra.mxu0 0
  %1472 = vmatprep.subr.bf16.mxu0 0
  %1473 = vmatpush1.bf16.msra.mxu0 0
  %1474 = vmatprep.subr.bf16.mxu0 0
  %1475 = vmatpush1.bf16.msra.mxu0 %v1455
  %1476 = vmatprep.subr.bf16.mxu0 0
  %1477 = vmatpush2.bf16.msra.mxu0 0
  %1478 = vmatprep.subr.bf16.mxu0 0
  %1479 = vmatpush2.bf16.msra.mxu0 0
  %1480 = vmatprep.subr.bf16.mxu0 0
  %1481 = vmatpush2.bf16.msra.mxu0 0
  %1482 = vmatprep.subr.bf16.mxu0 0
  %1483 = vmatpush2.bf16.msra.mxu0 0
  %1484 = vmatprep.subr.bf16.mxu0 0
  %1485 = vmatpush2.bf16.msra.mxu0 0
  %1486 = vmatprep.subr.bf16.mxu0 0
  %1487 = vmatpush2.bf16.msra.mxu0 0
  %1488 = vmatprep.subr.bf16.mxu0 0
  %1489 = vmatpush2.bf16.msra.mxu0 0
  %1490 = vmatprep.subr.bf16.mxu0 0
  %1491 = vmatpush2.bf16.msra.mxu0 0
  %1492 = vmatprep.mubr.bf16.mxu0 0
  %1493 = vmatmul.mubr.bf16.gmra.mxu0 %v1458
  %v1494 = vpop.f32.mrf.mxu0
  %v1495 = vadd.f32 0.0, %v1494
  %v1496 = vpop.f32.mrf.mxu0
  %v1497 = vpop.f32.mrf.mxu0
  %v1498 = vadd.f32 0.0, %v1497
  %v1499 = vpop.f32.mrf.mxu0
  %1500 = vdwg.mxu0
  %1501 = vrot.lane.b32.xlu0 %v1136, 104
  %v1502 = vpop.permute.xlu0 %1501
  %1503 = vrot.lane.b32.xlu0 %v1137, 72
  %v1504 = vpop.permute.xlu0 %1503
  %v1506 = vsel %vm261, %v1502, 0
  %v1509 = vsel %vm261, %v1504, 0
  %1511 = vmatprep.subr.bf16.mxu0 0
  %1512 = vmatpush1.bf16.xpose.msra.mxu0 0
  %1513 = vmatprep.subr.bf16.mxu0 0
  %1514 = vmatpush1.bf16.xpose.msra.mxu0 0
  %1515 = vmatprep.subr.bf16.mxu0 0
  %1516 = vmatpush1.bf16.xpose.msra.mxu0 0
  %1517 = vmatprep.subr.bf16.mxu0 0
  %1518 = vmatpush1.bf16.xpose.msra.mxu0 0
  %1519 = vmatprep.subr.bf16.mxu0 0
  %1520 = vmatpush1.bf16.xpose.msra.mxu0 0
  %1521 = vmatprep.subr.bf16.mxu0 0
  %1522 = vmatpush1.bf16.xpose.msra.mxu0 0
  %1523 = vmatprep.subr.bf16.mxu0 0
  %1524 = vmatpush1.bf16.xpose.msra.mxu0 0
  %1525 = vmatprep.subr.bf16.mxu0 0
  %1526 = vmatpush1.bf16.xpose.msra.mxu0 %v1509
  %1527 = vmatprep.subr.bf16.mxu0 0
  %1528 = vmatpush2.bf16.xpose.msra.mxu0 0
  %1529 = vmatprep.subr.bf16.mxu0 0
  %1530 = vmatpush2.bf16.xpose.msra.mxu0 0
  %1531 = vmatprep.subr.bf16.mxu0 0
  %1532 = vmatpush2.bf16.xpose.msra.mxu0 0
  %1533 = vmatprep.subr.bf16.mxu0 0
  %1534 = vmatpush2.bf16.xpose.msra.mxu0 0
  %1535 = vmatprep.subr.bf16.mxu0 0
  %1536 = vmatpush2.bf16.xpose.msra.mxu0 0
  %1537 = vmatprep.subr.bf16.mxu0 0
  %1538 = vmatpush2.bf16.xpose.msra.mxu0 0
  %1539 = vmatprep.subr.bf16.mxu0 0
  %1540 = vmatpush2.bf16.xpose.msra.mxu0 0
  %1541 = vmatprep.subr.bf16.mxu0 0
  %1542 = vmatpush2.bf16.xpose.msra.mxu0 0
  %1543 = vmatprep.mubr.bf16.mxu0 0
  %1544 = vmatmul.mubr.bf16.gmra.mxu0 %v1506
  %v1545 = vpop.f32.mrf.mxu0
  %v1546 = vadd.f32 %v128, %v1545
  %v1547 = vpop.f32.mrf.mxu0
  %v1548 = vpop.f32.mrf.mxu0
  %v1549 = vadd.f32 %v129, %v1548
  %v1550 = vpop.f32.mrf.mxu0
  %1551 = vdwg.mxu0
  %v1552 = vsel %vm309, %v1546, -inf
  %1553 = vmax.xlane.f32.xlu0 %v1552
  %v1554 = vpop.xlane.xlu0 %1553
  %v1555 = vsel %vm309, %v1549, -inf
  %1556 = vmax.xlane.f32.xlu0 %v1555
  %v1557 = vpop.xlane.xlu0 %1556
  %v1558 = vsub.f32 %v1546, %v1554
  %v1559 = vsub.f32 %v1549, %v1557
  %v1560 = vmul.f32 %v1558, 1.442695
  %v1561 = vpow.pop %v1560
  %v1562 = vmul.f32 %v1559, 1.442695
  %v1563 = vpow.pop %v1562
  %v1564 = vsel %vm309, %v1561, 0.0
  %1565 = vadd.xlane.f32.xlu0 %v1564
  %v1566 = vpop.xlane.xlu0 %1565
  %v1567 = vsel %vm309, %v1563, 0.0
  %1568 = vadd.xlane.f32.xlu0 %v1567
  %v1569 = vpop.xlane.xlu0 %1568
  %v1570 = vrcp.pop %v1566
  %v1571 = vrcp.pop %v1569
  %v1572 = vmul.f32 %v1561, %v1570
  %v1573 = vmul.f32 %v1563, %v1571
  %v1574 = vpack.c.bf16 %v1573, %v1572
  %1575 = vrot.lane.b32.xlu0 %v1137, 40
  %v1576 = vpop.permute.xlu0 %1575
  %v1579 = vsel %vm309, %v1574, 0
  %1581 = vmatprep.subr.bf16.mxu0 0
  %1582 = vmatpush1.bf16.msra.mxu0 0
  %1583 = vmatprep.subr.bf16.mxu0 0
  %1584 = vmatpush1.bf16.msra.mxu0 0
  %1585 = vmatprep.subr.bf16.mxu0 0
  %1586 = vmatpush1.bf16.msra.mxu0 0
  %1587 = vmatprep.subr.bf16.mxu0 0
  %1588 = vmatpush1.bf16.msra.mxu0 0
  %1589 = vmatprep.subr.bf16.mxu0 0
  %1590 = vmatpush1.bf16.msra.mxu0 0
  %1591 = vmatprep.subr.bf16.mxu0 0
  %1592 = vmatpush1.bf16.msra.mxu0 0
  %1593 = vmatprep.subr.bf16.mxu0 0
  %1594 = vmatpush1.bf16.msra.mxu0 0
  %1595 = vmatprep.subr.bf16.mxu0 0
  %1596 = vmatpush1.bf16.msra.mxu0 %v1576
  %1597 = vmatprep.subr.bf16.mxu0 0
  %1598 = vmatpush2.bf16.msra.mxu0 0
  %1599 = vmatprep.subr.bf16.mxu0 0
  %1600 = vmatpush2.bf16.msra.mxu0 0
  %1601 = vmatprep.subr.bf16.mxu0 0
  %1602 = vmatpush2.bf16.msra.mxu0 0
  %1603 = vmatprep.subr.bf16.mxu0 0
  %1604 = vmatpush2.bf16.msra.mxu0 0
  %1605 = vmatprep.subr.bf16.mxu0 0
  %1606 = vmatpush2.bf16.msra.mxu0 0
  %1607 = vmatprep.subr.bf16.mxu0 0
  %1608 = vmatpush2.bf16.msra.mxu0 0
  %1609 = vmatprep.subr.bf16.mxu0 0
  %1610 = vmatpush2.bf16.msra.mxu0 0
  %1611 = vmatprep.subr.bf16.mxu0 0
  %1612 = vmatpush2.bf16.msra.mxu0 0
  %1613 = vmatprep.mubr.bf16.mxu0 0
  %1614 = vmatmul.mubr.bf16.gmra.mxu0 %v1579
  %v1615 = vpop.f32.mrf.mxu0
  %v1616 = vadd.f32 0.0, %v1615
  %v1617 = vpop.f32.mrf.mxu0
  %v1618 = vpop.f32.mrf.mxu0
  %v1619 = vadd.f32 0.0, %v1618
  %v1620 = vpop.f32.mrf.mxu0
  %1621 = vdwg.mxu0
  %1624 = vrot.lane.b32.xlu0 %v1374, 8
  %v1625 = vpop.permute.xlu0 %1624
  %1626 = vrot.lane.b32.xlu0 %v1377, 8
  %v1627 = vpop.permute.xlu0 %1626
  %1632 = vrot.lane.b32.xlu0 %v1495, 16
  %v1633 = vpop.permute.xlu0 %1632
  %1634 = vrot.lane.b32.xlu0 %v1498, 16
  %v1635 = vpop.permute.xlu0 %1634
  %1640 = vrot.lane.b32.xlu0 %v1616, 24
  %v1641 = vpop.permute.xlu0 %1640
  %1642 = vrot.lane.b32.xlu0 %v1619, 24
  %v1643 = vpop.permute.xlu0 %1642
  %v1646 = vsel %vm261, %v1252, %v1625
  %v1647 = vsel %vm261, %v1255, %v1627
  %v1648 = vsel %vm309, %v1646, %v1633
  %v1649 = vsel %vm309, %v1647, %v1635
  %v1650 = vsel %vm772, %v1648, %v1641
  %v1651 = vsel %vm772, %v1649, %v1643
  %v1652 = vld [vmem:[%s39] sm:$0xff]
  %v1653 = vld [vmem:[%s39 + $0x8] sm:$0xff]
  %v1654 = vld [vmem:[%s39 + $0x10] sm:$0xff]
  %v1655 = vld [vmem:[%s39 + $0x18] sm:$0xff]
  %v1656 = vpack.c.bf16 %v1651, %v1650
  %v1657 = vpack.c.bf16 %v1653, %v1652
  %v1658 = vpack.c.bf16 %v1655, %v1654
  %v1659 = vld [vmem:[%s41] sm:$0x1]
  %v1661 = vlaneseq
  %v1662 = vshrl.u32 %v1661, 7
  %v1663 = vsub.s32 0, %v1662
  %v1664 = vrot.slane %v1659, %v1663
  %v1667 = vsel %vm134, %v1656, 0
  %1669 = vmatprep.subr.bf16.mxu0 0
  %1670 = vmatpush1.bf16.msra.mxu0 0
  %1671 = vmatprep.subr.bf16.mxu0 0
  %1672 = vmatpush1.bf16.msra.mxu0 0
  %1673 = vmatprep.subr.bf16.mxu0 0
  %1674 = vmatpush1.bf16.msra.mxu0 0
  %1675 = vmatprep.subr.bf16.mxu0 0
  %1676 = vmatpush1.bf16.msra.mxu0 0
  %1677 = vmatprep.subr.bf16.mxu0 0
  %1678 = vmatpush1.bf16.msra.mxu0 0
  %1679 = vmatprep.subr.bf16.mxu0 0
  %1680 = vmatpush1.bf16.msra.mxu0 0
  %1681 = vmatprep.subr.bf16.mxu0 0
  %1682 = vmatpush1.bf16.msra.mxu0 %v1658
  %1683 = vmatprep.subr.bf16.mxu0 0
  %1684 = vmatpush1.bf16.msra.mxu0 %v1657
  %1685 = vmatprep.subr.bf16.mxu0 0
  %1686 = vmatpush2.bf16.msra.mxu0 0
  %1687 = vmatprep.subr.bf16.mxu0 0
  %1688 = vmatpush2.bf16.msra.mxu0 0
  %1689 = vmatprep.subr.bf16.mxu0 0
  %1690 = vmatpush2.bf16.msra.mxu0 0
  %1691 = vmatprep.subr.bf16.mxu0 0
  %1692 = vmatpush2.bf16.msra.mxu0 0
  %1693 = vmatprep.subr.bf16.mxu0 0
  %1694 = vmatpush2.bf16.msra.mxu0 0
  %1695 = vmatprep.subr.bf16.mxu0 0
  %1696 = vmatpush2.bf16.msra.mxu0 0
  %1697 = vmatprep.subr.bf16.mxu0 0
  %1698 = vmatpush2.bf16.msra.mxu0 0
  %1699 = vmatprep.subr.bf16.mxu0 0
  %1700 = vmatpush2.bf16.msra.mxu0 0
  %1701 = vmatprep.mubr.bf16.mxu0 0
  %1702 = vmatmul.mubr.bf16.gmra.mxu0 %v1667
  %v1703 = vpop.f32.mrf.mxu0
  %v1704 = vadd.f32 %v1664, %v1703
  %v1705 = vpop.f32.mrf.mxu0
  %v1706 = vpop.f32.mrf.mxu0
  %v1707 = vadd.f32 %v1664, %v1706
  %v1708 = vpop.f32.mrf.mxu0
  %1709 = vdwg.mxu0
  %v1710 = vadd.f32 %v1704, %v1072
  %v1711 = vadd.f32 %v1707, %v1073
  %v1712 = vld [vmem:[%s43] sm:$0x1]
  %v1713 = vld [vmem:[%s45] sm:$0x1]
  %v1714 = vsel %vm134, %v1710, 0.0
  %1715 = vadd.xlane.f32.xlu0 %v1714
  %v1716 = vpop.xlane.xlu0 %1715
  %v1717 = vsel %vm134, %v1711, 0.0
  %1718 = vadd.xlane.f32.xlu0 %v1717
  %v1719 = vpop.xlane.xlu0 %1718
  %v1720 = vmul.f32 %v1716, %v141
  %v1721 = vmul.f32 %v1719, %v141
  %v1722 = vsub.f32 %v1710, %v1720
  %v1723 = vsub.f32 %v1711, %v1721
  %v1724 = vmul.f32 %v1722, %v1722
  %v1725 = vmul.f32 %v1723, %v1723
  %v1726 = vsel %vm134, %v1724, 0.0
  %1727 = vadd.xlane.f32.xlu0 %v1726
  %v1728 = vpop.xlane.xlu0 %1727
  %v1729 = vsel %vm134, %v1725, 0.0
  %1730 = vadd.xlane.f32.xlu0 %v1729
  %v1731 = vpop.xlane.xlu0 %1730
  %v1732 = vmul.f32 %v1728, %v141
  %v1733 = vmul.f32 %v1731, %v141
  %v1734 = vadd.f32 %v1732, 1e-05
  %v1735 = vadd.f32 %v1733, 1e-05
  %v1736 = vrsqrt.pop %v1734
  %v1737 = vrsqrt.pop %v1735
  %v1738 = vmul.f32 %v1722, %v1736
  %v1739 = vmul.f32 %v1723, %v1737
  %v1741 = vlaneseq
  %v1742 = vshrl.u32 %v1741, 7
  %v1743 = vsub.s32 0, %v1742
  %v1744 = vrot.slane %v1712, %v1743
  %v1746 = vmul.f32 %v1738, %v1744
  %v1747 = vmul.f32 %v1739, %v1744
  %v1749 = vlaneseq
  %v1750 = vshrl.u32 %v1749, 7
  %v1751 = vsub.s32 0, %v1750
  %v1752 = vrot.slane %v1713, %v1751
  %v1754 = vadd.f32 %v1746, %v1752
  %v1755 = vadd.f32 %v1747, %v1752
  %v1756 = vld [vmem:[%s47] sm:$0xff]
  %v1757 = vld [vmem:[%s47 + $0x8] sm:$0xff]
  %v1758 = vld [vmem:[%s47 + $0x10] sm:$0xff]
  %v1759 = vld [vmem:[%s47 + $0x18] sm:$0xff]
  %v1760 = vpack.c.bf16 %v1755, %v1754
  %v1761 = vpack.c.bf16 %v1757, %v1756
  %v1762 = vpack.c.bf16 %v1759, %v1758
  %v1763 = vld [vmem:[%s49] sm:$0x1]
  %v1765 = vlaneseq
  %v1766 = vshrl.u32 %v1765, 7
  %v1767 = vsub.s32 0, %v1766
  %v1768 = vrot.slane %v1763, %v1767
  %v1771 = vsel %vm134, %v1760, 0
  %1773 = vmatprep.subr.bf16.mxu0 0
  %1774 = vmatpush1.bf16.msra.mxu0 0
  %1775 = vmatprep.subr.bf16.mxu0 0
  %1776 = vmatpush1.bf16.msra.mxu0 0
  %1777 = vmatprep.subr.bf16.mxu0 0
  %1778 = vmatpush1.bf16.msra.mxu0 0
  %1779 = vmatprep.subr.bf16.mxu0 0
  %1780 = vmatpush1.bf16.msra.mxu0 0
  %1781 = vmatprep.subr.bf16.mxu0 0
  %1782 = vmatpush1.bf16.msra.mxu0 0
  %1783 = vmatprep.subr.bf16.mxu0 0
  %1784 = vmatpush1.bf16.msra.mxu0 0
  %1785 = vmatprep.subr.bf16.mxu0 0
  %1786 = vmatpush1.bf16.msra.mxu0 %v1762
  %1787 = vmatprep.subr.bf16.mxu0 0
  %1788 = vmatpush1.bf16.msra.mxu0 %v1761
  %1789 = vmatprep.subr.bf16.mxu0 0
  %1790 = vmatpush2.bf16.msra.mxu0 0
  %1791 = vmatprep.subr.bf16.mxu0 0
  %1792 = vmatpush2.bf16.msra.mxu0 0
  %1793 = vmatprep.subr.bf16.mxu0 0
  %1794 = vmatpush2.bf16.msra.mxu0 0
  %1795 = vmatprep.subr.bf16.mxu0 0
  %1796 = vmatpush2.bf16.msra.mxu0 0
  %1797 = vmatprep.subr.bf16.mxu0 0
  %1798 = vmatpush2.bf16.msra.mxu0 0
  %1799 = vmatprep.subr.bf16.mxu0 0
  %1800 = vmatpush2.bf16.msra.mxu0 0
  %1801 = vmatprep.subr.bf16.mxu0 0
  %1802 = vmatpush2.bf16.msra.mxu0 0
  %1803 = vmatprep.subr.bf16.mxu0 0
  %1804 = vmatpush2.bf16.msra.mxu0 0
  %1805 = vmatprep.mubr.bf16.mxu0 0
  %1806 = vmatmul.mubr.bf16.gmra.mxu0 %v1771
  %v1807 = vpop.f32.mrf.mxu0
  %v1808 = vadd.f32 %v1768, %v1807
  %v1809 = vpop.f32.mrf.mxu0
  %v1810 = vpop.f32.mrf.mxu0
  %v1811 = vadd.f32 %v1768, %v1810
  %v1812 = vpop.f32.mrf.mxu0
  %1813 = vdwg.mxu0
  %v1814 = vmul.f32 %v1808, 0.5
  %v1815 = vmul.f32 %v1811, 0.5
  %v1816 = vmul.f32 %v1808, 0.044715
  %v1817 = vmul.f32 %v1811, 0.044715
  %v1818 = vmul.f32 %v1816, %v1808
  %v1819 = vmul.f32 %v1817, %v1811
  %v1820 = vmul.f32 %v1818, %v1808
  %v1821 = vmul.f32 %v1819, %v1811
  %v1822 = vadd.f32 %v1808, %v1820
  %v1823 = vadd.f32 %v1811, %v1821
  %v1824 = vmul.f32 %v1822, 0.7978846
  %v1825 = vmul.f32 %v1823, 0.7978846
  %v1826 = vtanh.pop %v1824
  %v1827 = vtanh.pop %v1825
  %v1828 = vadd.f32 %v1826, 1.0
  %v1829 = vadd.f32 %v1827, 1.0
  %v1830 = vmul.f32 %v1814, %v1828
  %v1831 = vmul.f32 %v1815, %v1829
  %v1832 = vld [vmem:[%s51] sm:$0xff]
  %v1833 = vld [vmem:[%s51 + $0x8] sm:$0xff]
  %v1834 = vld [vmem:[%s51 + $0x10] sm:$0xff]
  %v1835 = vld [vmem:[%s51 + $0x18] sm:$0xff]
  %v1836 = vld [vmem:[%s51 + $0x20] sm:$0xff]
  %v1837 = vld [vmem:[%s51 + $0x28] sm:$0xff]
  %v1838 = vld [vmem:[%s51 + $0x30] sm:$0xff]
  %v1839 = vld [vmem:[%s51 + $0x38] sm:$0xff]
  %v1840 = vld [vmem:[%s51 + $0x40] sm:$0xff]
  %v1841 = vld [vmem:[%s51 + $0x48] sm:$0xff]
  %v1842 = vld [vmem:[%s51 + $0x50] sm:$0xff]
  %v1843 = vld [vmem:[%s51 + $0x58] sm:$0xff]
  %v1844 = vld [vmem:[%s51 + $0x60] sm:$0xff]
  %v1845 = vld [vmem:[%s51 + $0x68] sm:$0xff]
  %v1846 = vld [vmem:[%s51 + $0x70] sm:$0xff]
  %v1847 = vld [vmem:[%s51 + $0x78] sm:$0xff]
  %v1848 = vpack.c.bf16 %v1831, %v1830
  %v1849 = vpack.c.bf16 %v1833, %v1832
  %v1850 = vpack.c.bf16 %v1835, %v1834
  %v1851 = vpack.c.bf16 %v1837, %v1836
  %v1852 = vpack.c.bf16 %v1839, %v1838
  %v1853 = vpack.c.bf16 %v1841, %v1840
  %v1854 = vpack.c.bf16 %v1843, %v1842
  %v1855 = vpack.c.bf16 %v1845, %v1844
  %v1856 = vpack.c.bf16 %v1847, %v1846
  %v1857 = vld [vmem:[%s53] sm:$0x1]
  %v1859 = vlaneseq
  %v1860 = vshrl.u32 %v1859, 7
  %v1861 = vsub.s32 0, %v1860
  %v1862 = vrot.slane %v1857, %v1861
  %1864 = vmatprep.subr.bf16.mxu0 0
  %1865 = vmatpush1.bf16.msra.mxu0 %v1856
  %1866 = vmatprep.subr.bf16.mxu0 0
  %1867 = vmatpush1.bf16.msra.mxu0 %v1855
  %1868 = vmatprep.subr.bf16.mxu0 0
  %1869 = vmatpush1.bf16.msra.mxu0 %v1854
  %1870 = vmatprep.subr.bf16.mxu0 0
  %1871 = vmatpush1.bf16.msra.mxu0 %v1853
  %1872 = vmatprep.subr.bf16.mxu0 0
  %1873 = vmatpush1.bf16.msra.mxu0 %v1852
  %1874 = vmatprep.subr.bf16.mxu0 0
  %1875 = vmatpush1.bf16.msra.mxu0 %v1851
  %1876 = vmatprep.subr.bf16.mxu0 0
  %1877 = vmatpush1.bf16.msra.mxu0 %v1850
  %1878 = vmatprep.subr.bf16.mxu0 0
  %1879 = vmatpush1.bf16.msra.mxu0 %v1849
  %1880 = vmatprep.subr.bf16.mxu0 0
  %1881 = vmatpush2.bf16.msra.mxu0 0
  %1882 = vmatprep.subr.bf16.mxu0 0
  %1883 = vmatpush2.bf16.msra.mxu0 0
  %1884 = vmatprep.subr.bf16.mxu0 0
  %1885 = vmatpush2.bf16.msra.mxu0 0
  %1886 = vmatprep.subr.bf16.mxu0 0
  %1887 = vmatpush2.bf16.msra.mxu0 0
  %1888 = vmatprep.subr.bf16.mxu0 0
  %1889 = vmatpush2.bf16.msra.mxu0 0
  %1890 = vmatprep.subr.bf16.mxu0 0
  %1891 = vmatpush2.bf16.msra.mxu0 0
  %1892 = vmatprep.subr.bf16.mxu0 0
  %1893 = vmatpush2.bf16.msra.mxu0 0
  %1894 = vmatprep.subr.bf16.mxu0 0
  %1895 = vmatpush2.bf16.msra.mxu0 0
  %1896 = vmatprep.mubr.bf16.mxu0 0
  %1897 = vmatmul.mubr.bf16.gmra.mxu0 %v1848
  %v1898 = vpop.f32.mrf.mxu0
  %v1899 = vadd.f32 %v1862, %v1898
  %v1900 = vpop.f32.mrf.mxu0
  %v1901 = vpop.f32.mrf.mxu0
  %v1902 = vadd.f32 %v1862, %v1901
  %v1903 = vpop.f32.mrf.mxu0
  %1904 = vdwg.mxu0
  %v1905 = vadd.f32 %v1899, %v1754
  %v1906 = vadd.f32 %v1902, %v1755
  %v1907 = vld [vmem:[%s55] sm:$0x1]
  %v1908 = vld [vmem:[%s57] sm:$0x1]
  %v1909 = vsel %vm134, %v1905, 0.0
  %1910 = vadd.xlane.f32.xlu0 %v1909
  %v1911 = vpop.xlane.xlu0 %1910
  %v1912 = vsel %vm134, %v1906, 0.0
  %1913 = vadd.xlane.f32.xlu0 %v1912
  %v1914 = vpop.xlane.xlu0 %1913
  %v1915 = vmul.f32 %v1911, %v141
  %v1916 = vmul.f32 %v1914, %v141
  %v1917 = vsub.f32 %v1905, %v1915
  %v1918 = vsub.f32 %v1906, %v1916
  %v1919 = vmul.f32 %v1917, %v1917
  %v1920 = vmul.f32 %v1918, %v1918
  %v1921 = vsel %vm134, %v1919, 0.0
  %1922 = vadd.xlane.f32.xlu0 %v1921
  %v1923 = vpop.xlane.xlu0 %1922
  %v1924 = vsel %vm134, %v1920, 0.0
  %1925 = vadd.xlane.f32.xlu0 %v1924
  %v1926 = vpop.xlane.xlu0 %1925
  %v1927 = vmul.f32 %v1923, %v141
  %v1928 = vmul.f32 %v1926, %v141
  %v1929 = vadd.f32 %v1927, 1e-05
  %v1930 = vadd.f32 %v1928, 1e-05
  %v1931 = vrsqrt.pop %v1929
  %v1932 = vrsqrt.pop %v1930
  %v1933 = vmul.f32 %v1917, %v1931
  %v1934 = vmul.f32 %v1918, %v1932
  %v1936 = vlaneseq
  %v1937 = vshrl.u32 %v1936, 7
  %v1938 = vsub.s32 0, %v1937
  %v1939 = vrot.slane %v1907, %v1938
  %v1941 = vmul.f32 %v1933, %v1939
  %v1942 = vmul.f32 %v1934, %v1939
  %v1944 = vlaneseq
  %v1945 = vshrl.u32 %v1944, 7
  %v1946 = vsub.s32 0, %v1945
  %v1947 = vrot.slane %v1908, %v1946
  %v1949 = vadd.f32 %v1941, %v1947
  %v1950 = vadd.f32 %v1942, %v1947
  %1951 = vst.msk [vmem:[%s63] sm:$0xff] %vm134, %v1949
  %1952 = vst.msk [vmem:[%s63 + $0x8] sm:$0xff] %vm134, %v1950
  // Predicated region
  $region118: #{accelerator_transformer_forward.1} parent=0 // pred_check
    _
  $region119: #{accelerator_transformer_forward.1} parent=0 // pred_check_branch
    %1954 = sbr.rel (0) target = $region121
  $region120: #{accelerator_transformer_forward.1} parent=0 // pred_region
    _
  $region121: #{accelerator_transformer_forward.1} parent=0 // pred_fallthru
    _
  // Predicated region
  $region122: #{accelerator_transformer_forward.1} parent=0 // pred_check
    _
  $region123: #{accelerator_transformer_forward.1} parent=0 // pred_check_branch
    %1956 = sbr.rel (0) target = $region125
  $region124: #{accelerator_transformer_forward.1} parent=0 // pred_region
    _
  $region125: #{accelerator_transformer_forward.1} parent=0 // pred_fallthru
    _
  // Predicated region
  $region126: #{accelerator_transformer_forward.1} parent=0 // pred_check
    _
  $region127: #{accelerator_transformer_forward.1} parent=0 // pred_check_branch
    %1958 = sbr.rel (0) target = $region129
  $region128: #{accelerator_transformer_forward.1} parent=0 // pred_region
    _
  $region129: #{accelerator_transformer_forward.1} parent=0 // pred_fallthru
    _
  // Predicated region
  $region130: #{accelerator_transformer_forward.1} parent=0 // pred_check
    _
  $region131: #{accelerator_transformer_forward.1} parent=0 // pred_check_branch
    %1960 = sbr.rel (0) target = $region133
  $region132: #{accelerator_transformer_forward.1} parent=0 // pred_region
    _
  $region133: #{accelerator_transformer_forward.1} parent=0 // pred_fallthru
    _
  // Predicated region
  $region134: #{accelerator_transformer_forward.1} parent=0 // pred_check
    _
  $region135: #{accelerator_transformer_forward.1} parent=0 // pred_check_branch
    %1962 = sbr.rel (0) target = $region137
  $region136: #{accelerator_transformer_forward.1} parent=0 // pred_region
    _
  $region137: #{accelerator_transformer_forward.1} parent=0 // pred_fallthru
    _
  // Predicated region
  $region138: #{accelerator_transformer_forward.1} parent=0 // pred_check
    _
  $region139: #{accelerator_transformer_forward.1} parent=0 // pred_check_branch
    %1964 = sbr.rel (0) target = $region141
  $region140: #{accelerator_transformer_forward.1} parent=0 // pred_region
    _
  $region141: #{accelerator_transformer_forward.1} parent=0 // pred_fallthru
    _

</llo_original>
